<compile_context>
chip_gen: v7x
topology: tpu7x:2x2x1
jax: 0.10.0
libtpu: 0.0.40
codegen_flags: <defaults>
</compile_context>

<pallas_src>
import jax
import jax.numpy as jnp
from jax import lax
from jax.experimental import pallas as pl
from jax.experimental.pallas import tpu as pltpu

K_FUSED = 7  # every branch is evaluated as a zero-padded 7x7 conv


def _make_kernel(H, Wp, Cin, Cout, HWp):
    K = K_FUSED

    def kernel(x_ref, w_ref, b_ref, o_ref, col_ref):
        # x_ref:   (1, Cin, Lpad)   flat zero-padded image, row stride Wp
        # w_ref:   (Cout, K*K*Cin)  fused weight, column order (kh, kw, cin)
        # b_ref:   (Cout, 1)        fused bias
        # o_ref:   (1, Cout, HWp)   lane-dense output slab
        # col_ref: (K*K*Cin, HWp)   transposed im2col scratch (lanes = spatial)

        # Stage the transposed im2col: 49 lane-dense (Cin, HWp) slab copies.
        # Source is a static contiguous lane slice of the flat padded image;
        # destination store has lane offset 0 (unmasked along lanes).
        for kh in range(K):
            for kw in range(K):
                tap = kh * K + kw
                src = kh * Wp + kw  # static lane offset of this tap
                col_ref[tap * Cin:(tap + 1) * Cin, :] = x_ref[0, :, src:src + HWp]

        # One MXU matmul: (Cout, 49*Cin) @ (49*Cin, HWp) -> (Cout, HWp).
        acc = jnp.dot(w_ref[...], col_ref[...],
                      preferred_element_type=jnp.float32)
        o_ref[0] = (acc + b_ref[...]).astype(o_ref.dtype)

    return kernel


def _pack_params(params):
    """Fuse (w3,b3,w5,b5,w7,b7) into one (Cout, 49*Cin) weight and (Cout, 1) bias.

    w3 / w5 are zero-embedded into centered 7x7 windows (exact zeros), so the
    fused 7x7 conv is numerically identical to the three parallel convs.
    Weight column order is (kh, kw, cin), matching the im2col row layout.
    """
    w3, b3, w5, b5, w7, b7 = params
    K = K_FUSED

    def embed(w):
        off = (K - w.shape[0]) // 2
        return jnp.pad(w, ((off, off), (off, off), (0, 0), (0, 0)))

    w_full = jnp.concatenate([embed(w3), embed(w5), embed(w7)], axis=-1)  # (7,7,Cin,Cout)
    Cin, Cout = w_full.shape[2], w_full.shape[3]
    w_packed = jnp.transpose(w_full.reshape(K * K * Cin, Cout))           # (Cout, 49*Cin)
    b_packed = jnp.concatenate([b3, b5, b7], axis=-1).reshape(Cout, 1)    # (Cout, 1)
    return w_packed, b_packed, Cout


def multi_scale_conv_block(x_nchw, params):
    """params = (w3, b3, w5, b5, w7, b7) with HWIO weights and (1, C) biases."""
    N, Cin, H, W = x_nchw.shape
    K = K_FUSED
    pad = K // 2
    w_packed, b_packed, Cout = _pack_params(params)

    # Padded width chosen so H*Wp is a multiple of 128: im2col stores and the
    # output store are then fully lane-dense (unmasked vst).
    Wp = W + K - 1
    while (H * Wp) % 128:
        Wp += 1
    Hp = H + K - 1
    HWp = H * Wp
    # Flat length must cover the furthest tap read; round up to a lane tile.
    L_needed = (K - 1) * Wp + (K - 1) + HWp
    Lpad = pl.cdiv(L_needed, 128) * 128

    # Zero-pad spatially (halo 3 top/bottom/left; right pad grows W to Wp),
    # then flatten (H, W) -> flat spatial lanes.  Kernel keeps NCHW layout, so
    # no activation transpose is needed anywhere.
    xp = jnp.pad(x_nchw, ((0, 0), (0, 0), (pad, pad), (pad, Wp - W - pad)))
    x_flat = xp.reshape(N, Cin, Hp * Wp)
    x_flat = jnp.pad(x_flat, ((0, 0), (0, 0), (0, Lpad - Hp * Wp)))

    kernel = _make_kernel(H, Wp, Cin, Cout, HWp)

    out_flat = pl.pallas_call(
        kernel,
        out_shape=jax.ShapeDtypeStruct((N, Cout, HWp), x_nchw.dtype),
        grid_spec=pltpu.PrefetchScalarGridSpec(
            num_scalar_prefetch=0,
            grid=(N,),
            in_specs=[
                pl.BlockSpec((1, Cin, Lpad), lambda n: (n, 0, 0)),
                pl.BlockSpec(w_packed.shape, lambda n: (0, 0)),
                pl.BlockSpec(b_packed.shape, lambda n: (0, 0)),
            ],
            out_specs=pl.BlockSpec((1, Cout, HWp), lambda n: (n, 0, 0)),
            scratch_shapes=[
                pltpu.VMEM((K * K * Cin, HWp), jnp.float32),
            ],
        ),
        compiler_params=pltpu.CompilerParams(
            dimension_semantics=("parallel",)),  # no carry across batch -> v7x 2-TC shard
    )(x_flat, w_packed, b_packed)

    # Free contiguous reshape + cheap slice dropping the W-halo columns.
    return out_flat.reshape(N, Cout, H, Wp)[:, :, :, :W]


def reference(x_nchw, params):
    """Pure-JAX reference reproducing the PyTorch forward (NCHW conv + concat)."""
    w3, b3, w5, b5, w7, b7 = params

    def conv(w, b, pad):
        y = lax.conv_general_dilated(
            x_nchw, w, window_strides=(1, 1), padding=((pad, pad), (pad, pad)),
            dimension_numbers=('NCHW', 'HWIO', 'NCHW'))
        return y + b.reshape(1, -1, 1, 1)

    return jnp.concatenate([conv(w3, b3, 1), conv(w5, b5, 2), conv(w7, b7, 3)], axis=1)


def init_params(key, input_channels, output_channels):
    """Deterministic synthetic parameters matching the module's shapes."""
    c7 = output_channels // 8
    c5 = output_channels // 4
    c3 = output_channels - c7 - c5
    ks = jax.random.split(key, 6)
    scale = 0.1
    w3 = scale * jax.random.normal(ks[0], (3, 3, input_channels, c3), jnp.float32)
    b3 = scale * jax.random.normal(ks[1], (1, c3), jnp.float32)
    w5 = scale * jax.random.normal(ks[2], (5, 5, input_channels, c5), jnp.float32)
    b5 = scale * jax.random.normal(ks[3], (1, c5), jnp.float32)
    w7 = scale * jax.random.normal(ks[4], (7, 7, input_channels, c7), jnp.float32)
    b7 = scale * jax.random.normal(ks[5], (1, c7), jnp.float32)
    return (w3, b3, w5, b5, w7, b7)


if __name__ == "__main__":
    N, Cin, H, W = 2, 4, 16, 16
    Cout = 32

    root = jax.random.PRNGKey(0)
    kx, kp = jax.random.split(root)
    x = jax.random.normal(kx, (N, Cin, H, W), jnp.float32)   # NCHW like PyTorch
    params = init_params(kp, Cin, Cout)

    out = multi_scale_conv_block(x, params)
    out = jax.block_until_ready(out)

    ref = jax.block_until_ready(reference(x, params))
    assert out.shape == (N, Cout, H, W), out.shape
    assert jnp.allclose(out, ref, atol=1e-4, rtol=1e-4), float(jnp.max(jnp.abs(out - ref)))

    print("KERNEL_OK")
</pallas_src>

<mosaic_0001>
module attributes {stable_mosaic.version = 11 : i64} {
  func.func @kernel(%arg0: i32, %arg1: memref<1x4x640xf32, #tpu.memory_space<vmem>>, %arg2: memref<32x196xf32, #tpu.memory_space<vmem>>, %arg3: memref<32x1xf32, #tpu.memory_space<vmem>>, %arg4: memref<1x32x384xf32, #tpu.memory_space<vmem>>, %arg5: memref<196x384xf32, #tpu.memory_space<vmem>>) attributes {dimension_semantics = [#tpu.dimension_semantics<parallel>], iteration_bounds = array<i64: 2>, scalar_prefetch = 0 : i64, scratch_operands = 1 : i64, tpu.core_type = #tpu.core_type<tc>, window_params = [{transform_indices = @transform_0, window_bounds = array<i64: 1, 4, 640>}, {pipeline_mode = #tpu.pipeline_mode<synchronous>, transform_indices = @transform_1, window_bounds = array<i64: 32, 196>}, {pipeline_mode = #tpu.pipeline_mode<synchronous>, transform_indices = @transform_2, window_bounds = array<i64: 32, 1>}, {transform_indices = @transform_3, window_bounds = array<i64: 1, 32, 384>}]} {
    %c0 = arith.constant 0 : index
    %c0_0 = arith.constant 0 : index
    %c0_1 = arith.constant 0 : index
    %0 = vector.load %arg1[%c0, %c0_0, %c0_1] : memref<1x4x640xf32, #tpu.memory_space<vmem>>, vector<1x4x384xf32>
    %1 = vector.shape_cast %0 : vector<1x4x384xf32> to vector<4x384xf32>
    %c0_2 = arith.constant 0 : index
    %c0_3 = arith.constant 0 : index
    %2 = vector.load %arg5[%c0_2, %c0_3] : memref<196x384xf32, #tpu.memory_space<vmem>>, vector<4x384xf32>
    tpu.vector_store %arg5[%c0_2, %c0_3], %1 {strides = array<i32>} : memref<196x384xf32, #tpu.memory_space<vmem>>, vector<4x384xf32>,
    %c0_4 = arith.constant 0 : index
    %c0_5 = arith.constant 0 : index
    %c1 = arith.constant 1 : index
    %3 = vector.load %arg1[%c0_4, %c0_5, %c1] : memref<1x4x640xf32, #tpu.memory_space<vmem>>, vector<1x4x384xf32>
    %4 = vector.shape_cast %3 : vector<1x4x384xf32> to vector<4x384xf32>
    %c4 = arith.constant 4 : index
    %c0_6 = arith.constant 0 : index
    %5 = vector.load %arg5[%c4, %c0_6] : memref<196x384xf32, #tpu.memory_space<vmem>>, vector<4x384xf32>
    tpu.vector_store %arg5[%c4, %c0_6], %4 {strides = array<i32>} : memref<196x384xf32, #tpu.memory_space<vmem>>, vector<4x384xf32>,
    %c0_7 = arith.constant 0 : index
    %c0_8 = arith.constant 0 : index
    %c2 = arith.constant 2 : index
    %6 = vector.load %arg1[%c0_7, %c0_8, %c2] : memref<1x4x640xf32, #tpu.memory_space<vmem>>, vector<1x4x384xf32>
    %7 = vector.shape_cast %6 : vector<1x4x384xf32> to vector<4x384xf32>
    %c8 = arith.constant 8 : index
    %c0_9 = arith.constant 0 : index
    %8 = vector.load %arg5[%c8, %c0_9] : memref<196x384xf32, #tpu.memory_space<vmem>>, vector<4x384xf32>
    tpu.vector_store %arg5[%c8, %c0_9], %7 {strides = array<i32>} : memref<196x384xf32, #tpu.memory_space<vmem>>, vector<4x384xf32>,
    %c0_10 = arith.constant 0 : index
    %c0_11 = arith.constant 0 : index
    %c3 = arith.constant 3 : index
    %9 = vector.load %arg1[%c0_10, %c0_11, %c3] : memref<1x4x640xf32, #tpu.memory_space<vmem>>, vector<1x4x384xf32>
    %10 = vector.shape_cast %9 : vector<1x4x384xf32> to vector<4x384xf32>
    %c12 = arith.constant 12 : index
    %c0_12 = arith.constant 0 : index
    %11 = vector.load %arg5[%c12, %c0_12] : memref<196x384xf32, #tpu.memory_space<vmem>>, vector<4x384xf32>
    tpu.vector_store %arg5[%c12, %c0_12], %10 {strides = array<i32>} : memref<196x384xf32, #tpu.memory_space<vmem>>, vector<4x384xf32>,
    %c0_13 = arith.constant 0 : index
    %c0_14 = arith.constant 0 : index
    %c4_15 = arith.constant 4 : index
    %12 = vector.load %arg1[%c0_13, %c0_14, %c4_15] : memref<1x4x640xf32, #tpu.memory_space<vmem>>, vector<1x4x384xf32>
    %13 = vector.shape_cast %12 : vector<1x4x384xf32> to vector<4x384xf32>
    %c16 = arith.constant 16 : index
    %c0_16 = arith.constant 0 : index
    %14 = vector.load %arg5[%c16, %c0_16] : memref<196x384xf32, #tpu.memory_space<vmem>>, vector<4x384xf32>
    tpu.vector_store %arg5[%c16, %c0_16], %13 {strides = array<i32>} : memref<196x384xf32, #tpu.memory_space<vmem>>, vector<4x384xf32>,
    %c0_17 = arith.constant 0 : index
    %c0_18 = arith.constant 0 : index
    %c5 = arith.constant 5 : index
    %15 = vector.load %arg1[%c0_17, %c0_18, %c5] : memref<1x4x640xf32, #tpu.memory_space<vmem>>, vector<1x4x384xf32>
    %16 = vector.shape_cast %15 : vector<1x4x384xf32> to vector<4x384xf32>
    %c20 = arith.constant 20 : index
    %c0_19 = arith.constant 0 : index
    %17 = vector.load %arg5[%c20, %c0_19] : memref<196x384xf32, #tpu.memory_space<vmem>>, vector<4x384xf32>
    tpu.vector_store %arg5[%c20, %c0_19], %16 {strides = array<i32>} : memref<196x384xf32, #tpu.memory_space<vmem>>, vector<4x384xf32>,
    %c0_20 = arith.constant 0 : index
    %c0_21 = arith.constant 0 : index
    %c6 = arith.constant 6 : index
    %18 = vector.load %arg1[%c0_20, %c0_21, %c6] : memref<1x4x640xf32, #tpu.memory_space<vmem>>, vector<1x4x384xf32>
    %19 = vector.shape_cast %18 : vector<1x4x384xf32> to vector<4x384xf32>
    %c24 = arith.constant 24 : index
    %c0_22 = arith.constant 0 : index
    %20 = vector.load %arg5[%c24, %c0_22] : memref<196x384xf32, #tpu.memory_space<vmem>>, vector<4x384xf32>
    tpu.vector_store %arg5[%c24, %c0_22], %19 {strides = array<i32>} : memref<196x384xf32, #tpu.memory_space<vmem>>, vector<4x384xf32>,
    %c0_23 = arith.constant 0 : index
    %c0_24 = arith.constant 0 : index
    %c24_25 = arith.constant 24 : index
    %21 = vector.load %arg1[%c0_23, %c0_24, %c24_25] : memref<1x4x640xf32, #tpu.memory_space<vmem>>, vector<1x4x384xf32>
    %22 = vector.shape_cast %21 : vector<1x4x384xf32> to vector<4x384xf32>
    %c28 = arith.constant 28 : index
    %c0_26 = arith.constant 0 : index
    %23 = vector.load %arg5[%c28, %c0_26] : memref<196x384xf32, #tpu.memory_space<vmem>>, vector<4x384xf32>
    tpu.vector_store %arg5[%c28, %c0_26], %22 {strides = array<i32>} : memref<196x384xf32, #tpu.memory_space<vmem>>, vector<4x384xf32>,
    %c0_27 = arith.constant 0 : index
    %c0_28 = arith.constant 0 : index
    %c25 = arith.constant 25 : index
    %24 = vector.load %arg1[%c0_27, %c0_28, %c25] : memref<1x4x640xf32, #tpu.memory_space<vmem>>, vector<1x4x384xf32>
    %25 = vector.shape_cast %24 : vector<1x4x384xf32> to vector<4x384xf32>
    %c32 = arith.constant 32 : index
    %c0_29 = arith.constant 0 : index
    %26 = vector.load %arg5[%c32, %c0_29] : memref<196x384xf32, #tpu.memory_space<vmem>>, vector<4x384xf32>
    tpu.vector_store %arg5[%c32, %c0_29], %25 {strides = array<i32>} : memref<196x384xf32, #tpu.memory_space<vmem>>, vector<4x384xf32>,
    %c0_30 = arith.constant 0 : index
    %c0_31 = arith.constant 0 : index
    %c26 = arith.constant 26 : index
    %27 = vector.load %arg1[%c0_30, %c0_31, %c26] : memref<1x4x640xf32, #tpu.memory_space<vmem>>, vector<1x4x384xf32>
    %28 = vector.shape_cast %27 : vector<1x4x384xf32> to vector<4x384xf32>
    %c36 = arith.constant 36 : index
    %c0_32 = arith.constant 0 : index
    %29 = vector.load %arg5[%c36, %c0_32] : memref<196x384xf32, #tpu.memory_space<vmem>>, vector<4x384xf32>
    tpu.vector_store %arg5[%c36, %c0_32], %28 {strides = array<i32>} : memref<196x384xf32, #tpu.memory_space<vmem>>, vector<4x384xf32>,
    %c0_33 = arith.constant 0 : index
    %c0_34 = arith.constant 0 : index
    %c27 = arith.constant 27 : index
    %30 = vector.load %arg1[%c0_33, %c0_34, %c27] : memref<1x4x640xf32, #tpu.memory_space<vmem>>, vector<1x4x384xf32>
    %31 = vector.shape_cast %30 : vector<1x4x384xf32> to vector<4x384xf32>
    %c40 = arith.constant 40 : index
    %c0_35 = arith.constant 0 : index
    %32 = vector.load %arg5[%c40, %c0_35] : memref<196x384xf32, #tpu.memory_space<vmem>>, vector<4x384xf32>
    tpu.vector_store %arg5[%c40, %c0_35], %31 {strides = array<i32>} : memref<196x384xf32, #tpu.memory_space<vmem>>, vector<4x384xf32>,
    %c0_36 = arith.constant 0 : index
    %c0_37 = arith.constant 0 : index
    %c28_38 = arith.constant 28 : index
    %33 = vector.load %arg1[%c0_36, %c0_37, %c28_38] : memref<1x4x640xf32, #tpu.memory_space<vmem>>, vector<1x4x384xf32>
    %34 = vector.shape_cast %33 : vector<1x4x384xf32> to vector<4x384xf32>
    %c44 = arith.constant 44 : index
    %c0_39 = arith.constant 0 : index
    %35 = vector.load %arg5[%c44, %c0_39] : memref<196x384xf32, #tpu.memory_space<vmem>>, vector<4x384xf32>
    tpu.vector_store %arg5[%c44, %c0_39], %34 {strides = array<i32>} : memref<196x384xf32, #tpu.memory_space<vmem>>, vector<4x384xf32>,
    %c0_40 = arith.constant 0 : index
    %c0_41 = arith.constant 0 : index
    %c29 = arith.constant 29 : index
    %36 = vector.load %arg1[%c0_40, %c0_41, %c29] : memref<1x4x640xf32, #tpu.memory_space<vmem>>, vector<1x4x384xf32>
    %37 = vector.shape_cast %36 : vector<1x4x384xf32> to vector<4x384xf32>
    %c48 = arith.constant 48 : index
    %c0_42 = arith.constant 0 : index
    %38 = vector.load %arg5[%c48, %c0_42] : memref<196x384xf32, #tpu.memory_space<vmem>>, vector<4x384xf32>
    tpu.vector_store %arg5[%c48, %c0_42], %37 {strides = array<i32>} : memref<196x384xf32, #tpu.memory_space<vmem>>, vector<4x384xf32>,
    %c0_43 = arith.constant 0 : index
    %c0_44 = arith.constant 0 : index
    %c30 = arith.constant 30 : index
    %39 = vector.load %arg1[%c0_43, %c0_44, %c30] : memref<1x4x640xf32, #tpu.memory_space<vmem>>, vector<1x4x384xf32>
    %40 = vector.shape_cast %39 : vector<1x4x384xf32> to vector<4x384xf32>
    %c52 = arith.constant 52 : index
    %c0_45 = arith.constant 0 : index
    %41 = vector.load %arg5[%c52, %c0_45] : memref<196x384xf32, #tpu.memory_space<vmem>>, vector<4x384xf32>
    tpu.vector_store %arg5[%c52, %c0_45], %40 {strides = array<i32>} : memref<196x384xf32, #tpu.memory_space<vmem>>, vector<4x384xf32>,
    %c0_46 = arith.constant 0 : index
    %c0_47 = arith.constant 0 : index
    %c48_48 = arith.constant 48 : index
    %42 = vector.load %arg1[%c0_46, %c0_47, %c48_48] : memref<1x4x640xf32, #tpu.memory_space<vmem>>, vector<1x4x384xf32>
    %43 = vector.shape_cast %42 : vector<1x4x384xf32> to vector<4x384xf32>
    %c56 = arith.constant 56 : index
    %c0_49 = arith.constant 0 : index
    %44 = vector.load %arg5[%c56, %c0_49] : memref<196x384xf32, #tpu.memory_space<vmem>>, vector<4x384xf32>
    tpu.vector_store %arg5[%c56, %c0_49], %43 {strides = array<i32>} : memref<196x384xf32, #tpu.memory_space<vmem>>, vector<4x384xf32>,
    %c0_50 = arith.constant 0 : index
    %c0_51 = arith.constant 0 : index
    %c49 = arith.constant 49 : index
    %45 = vector.load %arg1[%c0_50, %c0_51, %c49] : memref<1x4x640xf32, #tpu.memory_space<vmem>>, vector<1x4x384xf32>
    %46 = vector.shape_cast %45 : vector<1x4x384xf32> to vector<4x384xf32>
    %c60 = arith.constant 60 : index
    %c0_52 = arith.constant 0 : index
    %47 = vector.load %arg5[%c60, %c0_52] : memref<196x384xf32, #tpu.memory_space<vmem>>, vector<4x384xf32>
    tpu.vector_store %arg5[%c60, %c0_52], %46 {strides = array<i32>} : memref<196x384xf32, #tpu.memory_space<vmem>>, vector<4x384xf32>,
    %c0_53 = arith.constant 0 : index
    %c0_54 = arith.constant 0 : index
    %c50 = arith.constant 50 : index
    %48 = vector.load %arg1[%c0_53, %c0_54, %c50] : memref<1x4x640xf32, #tpu.memory_space<vmem>>, vector<1x4x384xf32>
    %49 = vector.shape_cast %48 : vector<1x4x384xf32> to vector<4x384xf32>
    %c64 = arith.constant 64 : index
    %c0_55 = arith.constant 0 : index
    %50 = vector.load %arg5[%c64, %c0_55] : memref<196x384xf32, #tpu.memory_space<vmem>>, vector<4x384xf32>
    tpu.vector_store %arg5[%c64, %c0_55], %49 {strides = array<i32>} : memref<196x384xf32, #tpu.memory_space<vmem>>, vector<4x384xf32>,
    %c0_56 = arith.constant 0 : index
    %c0_57 = arith.constant 0 : index
    %c51 = arith.constant 51 : index
    %51 = vector.load %arg1[%c0_56, %c0_57, %c51] : memref<1x4x640xf32, #tpu.memory_space<vmem>>, vector<1x4x384xf32>
    %52 = vector.shape_cast %51 : vector<1x4x384xf32> to vector<4x384xf32>
    %c68 = arith.constant 68 : index
    %c0_58 = arith.constant 0 : index
    %53 = vector.load %arg5[%c68, %c0_58] : memref<196x384xf32, #tpu.memory_space<vmem>>, vector<4x384xf32>
    tpu.vector_store %arg5[%c68, %c0_58], %52 {strides = array<i32>} : memref<196x384xf32, #tpu.memory_space<vmem>>, vector<4x384xf32>,
    %c0_59 = arith.constant 0 : index
    %c0_60 = arith.constant 0 : index
    %c52_61 = arith.constant 52 : index
    %54 = vector.load %arg1[%c0_59, %c0_60, %c52_61] : memref<1x4x640xf32, #tpu.memory_space<vmem>>, vector<1x4x384xf32>
    %55 = vector.shape_cast %54 : vector<1x4x384xf32> to vector<4x384xf32>
    %c72 = arith.constant 72 : index
    %c0_62 = arith.constant 0 : index
    %56 = vector.load %arg5[%c72, %c0_62] : memref<196x384xf32, #tpu.memory_space<vmem>>, vector<4x384xf32>
    tpu.vector_store %arg5[%c72, %c0_62], %55 {strides = array<i32>} : memref<196x384xf32, #tpu.memory_space<vmem>>, vector<4x384xf32>,
    %c0_63 = arith.constant 0 : index
    %c0_64 = arith.constant 0 : index
    %c53 = arith.constant 53 : index
    %57 = vector.load %arg1[%c0_63, %c0_64, %c53] : memref<1x4x640xf32, #tpu.memory_space<vmem>>, vector<1x4x384xf32>
    %58 = vector.shape_cast %57 : vector<1x4x384xf32> to vector<4x384xf32>
    %c76 = arith.constant 76 : index
    %c0_65 = arith.constant 0 : index
    %59 = vector.load %arg5[%c76, %c0_65] : memref<196x384xf32, #tpu.memory_space<vmem>>, vector<4x384xf32>
    tpu.vector_store %arg5[%c76, %c0_65], %58 {strides = array<i32>} : memref<196x384xf32, #tpu.memory_space<vmem>>, vector<4x384xf32>,
    %c0_66 = arith.constant 0 : index
    %c0_67 = arith.constant 0 : index
    %c54 = arith.constant 54 : index
    %60 = vector.load %arg1[%c0_66, %c0_67, %c54] : memref<1x4x640xf32, #tpu.memory_space<vmem>>, vector<1x4x384xf32>
    %61 = vector.shape_cast %60 : vector<1x4x384xf32> to vector<4x384xf32>
    %c80 = arith.constant 80 : index
    %c0_68 = arith.constant 0 : index
    %62 = vector.load %arg5[%c80, %c0_68] : memref<196x384xf32, #tpu.memory_space<vmem>>, vector<4x384xf32>
    tpu.vector_store %arg5[%c80, %c0_68], %61 {strides = array<i32>} : memref<196x384xf32, #tpu.memory_space<vmem>>, vector<4x384xf32>,
    %c0_69 = arith.constant 0 : index
    %c0_70 = arith.constant 0 : index
    %c72_71 = arith.constant 72 : index
    %63 = vector.load %arg1[%c0_69, %c0_70, %c72_71] : memref<1x4x640xf32, #tpu.memory_space<vmem>>, vector<1x4x384xf32>
    %64 = vector.shape_cast %63 : vector<1x4x384xf32> to vector<4x384xf32>
    %c84 = arith.constant 84 : index
    %c0_72 = arith.constant 0 : index
    %65 = vector.load %arg5[%c84, %c0_72] : memref<196x384xf32, #tpu.memory_space<vmem>>, vector<4x384xf32>
    tpu.vector_store %arg5[%c84, %c0_72], %64 {strides = array<i32>} : memref<196x384xf32, #tpu.memory_space<vmem>>, vector<4x384xf32>,
    %c0_73 = arith.constant 0 : index
    %c0_74 = arith.constant 0 : index
    %c73 = arith.constant 73 : index
    %66 = vector.load %arg1[%c0_73, %c0_74, %c73] : memref<1x4x640xf32, #tpu.memory_space<vmem>>, vector<1x4x384xf32>
    %67 = vector.shape_cast %66 : vector<1x4x384xf32> to vector<4x384xf32>
    %c88 = arith.constant 88 : index
    %c0_75 = arith.constant 0 : index
    %68 = vector.load %arg5[%c88, %c0_75] : memref<196x384xf32, #tpu.memory_space<vmem>>, vector<4x384xf32>
    tpu.vector_store %arg5[%c88, %c0_75], %67 {strides = array<i32>} : memref<196x384xf32, #tpu.memory_space<vmem>>, vector<4x384xf32>,
    %c0_76 = arith.constant 0 : index
    %c0_77 = arith.constant 0 : index
    %c74 = arith.constant 74 : index
    %69 = vector.load %arg1[%c0_76, %c0_77, %c74] : memref<1x4x640xf32, #tpu.memory_space<vmem>>, vector<1x4x384xf32>
    %70 = vector.shape_cast %69 : vector<1x4x384xf32> to vector<4x384xf32>
    %c92 = arith.constant 92 : index
    %c0_78 = arith.constant 0 : index
    %71 = vector.load %arg5[%c92, %c0_78] : memref<196x384xf32, #tpu.memory_space<vmem>>, vector<4x384xf32>
    tpu.vector_store %arg5[%c92, %c0_78], %70 {strides = array<i32>} : memref<196x384xf32, #tpu.memory_space<vmem>>, vector<4x384xf32>,
    %c0_79 = arith.constant 0 : index
    %c0_80 = arith.constant 0 : index
    %c75 = arith.constant 75 : index
    %72 = vector.load %arg1[%c0_79, %c0_80, %c75] : memref<1x4x640xf32, #tpu.memory_space<vmem>>, vector<1x4x384xf32>
    %73 = vector.shape_cast %72 : vector<1x4x384xf32> to vector<4x384xf32>
    %c96 = arith.constant 96 : index
    %c0_81 = arith.constant 0 : index
    %74 = vector.load %arg5[%c96, %c0_81] : memref<196x384xf32, #tpu.memory_space<vmem>>, vector<4x384xf32>
    tpu.vector_store %arg5[%c96, %c0_81], %73 {strides = array<i32>} : memref<196x384xf32, #tpu.memory_space<vmem>>, vector<4x384xf32>,
    %c0_82 = arith.constant 0 : index
    %c0_83 = arith.constant 0 : index
    %c76_84 = arith.constant 76 : index
    %75 = vector.load %arg1[%c0_82, %c0_83, %c76_84] : memref<1x4x640xf32, #tpu.memory_space<vmem>>, vector<1x4x384xf32>
    %76 = vector.shape_cast %75 : vector<1x4x384xf32> to vector<4x384xf32>
    %c100 = arith.constant 100 : index
    %c0_85 = arith.constant 0 : index
    %77 = vector.load %arg5[%c100, %c0_85] : memref<196x384xf32, #tpu.memory_space<vmem>>, vector<4x384xf32>
    tpu.vector_store %arg5[%c100, %c0_85], %76 {strides = array<i32>} : memref<196x384xf32, #tpu.memory_space<vmem>>, vector<4x384xf32>,
    %c0_86 = arith.constant 0 : index
    %c0_87 = arith.constant 0 : index
    %c77 = arith.constant 77 : index
    %78 = vector.load %arg1[%c0_86, %c0_87, %c77] : memref<1x4x640xf32, #tpu.memory_space<vmem>>, vector<1x4x384xf32>
    %79 = vector.shape_cast %78 : vector<1x4x384xf32> to vector<4x384xf32>
    %c104 = arith.constant 104 : index
    %c0_88 = arith.constant 0 : index
    %80 = vector.load %arg5[%c104, %c0_88] : memref<196x384xf32, #tpu.memory_space<vmem>>, vector<4x384xf32>
    tpu.vector_store %arg5[%c104, %c0_88], %79 {strides = array<i32>} : memref<196x384xf32, #tpu.memory_space<vmem>>, vector<4x384xf32>,
    %c0_89 = arith.constant 0 : index
    %c0_90 = arith.constant 0 : index
    %c78 = arith.constant 78 : index
    %81 = vector.load %arg1[%c0_89, %c0_90, %c78] : memref<1x4x640xf32, #tpu.memory_space<vmem>>, vector<1x4x384xf32>
    %82 = vector.shape_cast %81 : vector<1x4x384xf32> to vector<4x384xf32>
    %c108 = arith.constant 108 : index
    %c0_91 = arith.constant 0 : index
    %83 = vector.load %arg5[%c108, %c0_91] : memref<196x384xf32, #tpu.memory_space<vmem>>, vector<4x384xf32>
    tpu.vector_store %arg5[%c108, %c0_91], %82 {strides = array<i32>} : memref<196x384xf32, #tpu.memory_space<vmem>>, vector<4x384xf32>,
    %c0_92 = arith.constant 0 : index
    %c0_93 = arith.constant 0 : index
    %c96_94 = arith.constant 96 : index
    %84 = vector.load %arg1[%c0_92, %c0_93, %c96_94] : memref<1x4x640xf32, #tpu.memory_space<vmem>>, vector<1x4x384xf32>
    %85 = vector.shape_cast %84 : vector<1x4x384xf32> to vector<4x384xf32>
    %c112 = arith.constant 112 : index
    %c0_95 = arith.constant 0 : index
    %86 = vector.load %arg5[%c112, %c0_95] : memref<196x384xf32, #tpu.memory_space<vmem>>, vector<4x384xf32>
    tpu.vector_store %arg5[%c112, %c0_95], %85 {strides = array<i32>} : memref<196x384xf32, #tpu.memory_space<vmem>>, vector<4x384xf32>,
    %c0_96 = arith.constant 0 : index
    %c0_97 = arith.constant 0 : index
    %c97 = arith.constant 97 : index
    %87 = vector.load %arg1[%c0_96, %c0_97, %c97] : memref<1x4x640xf32, #tpu.memory_space<vmem>>, vector<1x4x384xf32>
    %88 = vector.shape_cast %87 : vector<1x4x384xf32> to vector<4x384xf32>
    %c116 = arith.constant 116 : index
    %c0_98 = arith.constant 0 : index
    %89 = vector.load %arg5[%c116, %c0_98] : memref<196x384xf32, #tpu.memory_space<vmem>>, vector<4x384xf32>
    tpu.vector_store %arg5[%c116, %c0_98], %88 {strides = array<i32>} : memref<196x384xf32, #tpu.memory_space<vmem>>, vector<4x384xf32>,
    %c0_99 = arith.constant 0 : index
    %c0_100 = arith.constant 0 : index
    %c98 = arith.constant 98 : index
    %90 = vector.load %arg1[%c0_99, %c0_100, %c98] : memref<1x4x640xf32, #tpu.memory_space<vmem>>, vector<1x4x384xf32>
    %91 = vector.shape_cast %90 : vector<1x4x384xf32> to vector<4x384xf32>
    %c120 = arith.constant 120 : index
    %c0_101 = arith.constant 0 : index
    %92 = vector.load %arg5[%c120, %c0_101] : memref<196x384xf32, #tpu.memory_space<vmem>>, vector<4x384xf32>
    tpu.vector_store %arg5[%c120, %c0_101], %91 {strides = array<i32>} : memref<196x384xf32, #tpu.memory_space<vmem>>, vector<4x384xf32>,
    %c0_102 = arith.constant 0 : index
    %c0_103 = arith.constant 0 : index
    %c99 = arith.constant 99 : index
    %93 = vector.load %arg1[%c0_102, %c0_103, %c99] : memref<1x4x640xf32, #tpu.memory_space<vmem>>, vector<1x4x384xf32>
    %94 = vector.shape_cast %93 : vector<1x4x384xf32> to vector<4x384xf32>
    %c124 = arith.constant 124 : index
    %c0_104 = arith.constant 0 : index
    %95 = vector.load %arg5[%c124, %c0_104] : memref<196x384xf32, #tpu.memory_space<vmem>>, vector<4x384xf32>
    tpu.vector_store %arg5[%c124, %c0_104], %94 {strides = array<i32>} : memref<196x384xf32, #tpu.memory_space<vmem>>, vector<4x384xf32>,
    %c0_105 = arith.constant 0 : index
    %c0_106 = arith.constant 0 : index
    %c100_107 = arith.constant 100 : index
    %96 = vector.load %arg1[%c0_105, %c0_106, %c100_107] : memref<1x4x640xf32, #tpu.memory_space<vmem>>, vector<1x4x384xf32>
    %97 = vector.shape_cast %96 : vector<1x4x384xf32> to vector<4x384xf32>
    %c128 = arith.constant 128 : index
    %c0_108 = arith.constant 0 : index
    %98 = vector.load %arg5[%c128, %c0_108] : memref<196x384xf32, #tpu.memory_space<vmem>>, vector<4x384xf32>
    tpu.vector_store %arg5[%c128, %c0_108], %97 {strides = array<i32>} : memref<196x384xf32, #tpu.memory_space<vmem>>, vector<4x384xf32>,
    %c0_109 = arith.constant 0 : index
    %c0_110 = arith.constant 0 : index
    %c101 = arith.constant 101 : index
    %99 = vector.load %arg1[%c0_109, %c0_110, %c101] : memref<1x4x640xf32, #tpu.memory_space<vmem>>, vector<1x4x384xf32>
    %100 = vector.shape_cast %99 : vector<1x4x384xf32> to vector<4x384xf32>
    %c132 = arith.constant 132 : index
    %c0_111 = arith.constant 0 : index
    %101 = vector.load %arg5[%c132, %c0_111] : memref<196x384xf32, #tpu.memory_space<vmem>>, vector<4x384xf32>
    tpu.vector_store %arg5[%c132, %c0_111], %100 {strides = array<i32>} : memref<196x384xf32, #tpu.memory_space<vmem>>, vector<4x384xf32>,
    %c0_112 = arith.constant 0 : index
    %c0_113 = arith.constant 0 : index
    %c102 = arith.constant 102 : index
    %102 = vector.load %arg1[%c0_112, %c0_113, %c102] : memref<1x4x640xf32, #tpu.memory_space<vmem>>, vector<1x4x384xf32>
    %103 = vector.shape_cast %102 : vector<1x4x384xf32> to vector<4x384xf32>
    %c136 = arith.constant 136 : index
    %c0_114 = arith.constant 0 : index
    %104 = vector.load %arg5[%c136, %c0_114] : memref<196x384xf32, #tpu.memory_space<vmem>>, vector<4x384xf32>
    tpu.vector_store %arg5[%c136, %c0_114], %103 {strides = array<i32>} : memref<196x384xf32, #tpu.memory_space<vmem>>, vector<4x384xf32>,
    %c0_115 = arith.constant 0 : index
    %c0_116 = arith.constant 0 : index
    %c120_117 = arith.constant 120 : index
    %105 = vector.load %arg1[%c0_115, %c0_116, %c120_117] : memref<1x4x640xf32, #tpu.memory_space<vmem>>, vector<1x4x384xf32>
    %106 = vector.shape_cast %105 : vector<1x4x384xf32> to vector<4x384xf32>
    %c140 = arith.constant 140 : index
    %c0_118 = arith.constant 0 : index
    %107 = vector.load %arg5[%c140, %c0_118] : memref<196x384xf32, #tpu.memory_space<vmem>>, vector<4x384xf32>
    tpu.vector_store %arg5[%c140, %c0_118], %106 {strides = array<i32>} : memref<196x384xf32, #tpu.memory_space<vmem>>, vector<4x384xf32>,
    %c0_119 = arith.constant 0 : index
    %c0_120 = arith.constant 0 : index
    %c121 = arith.constant 121 : index
    %108 = vector.load %arg1[%c0_119, %c0_120, %c121] : memref<1x4x640xf32, #tpu.memory_space<vmem>>, vector<1x4x384xf32>
    %109 = vector.shape_cast %108 : vector<1x4x384xf32> to vector<4x384xf32>
    %c144 = arith.constant 144 : index
    %c0_121 = arith.constant 0 : index
    %110 = vector.load %arg5[%c144, %c0_121] : memref<196x384xf32, #tpu.memory_space<vmem>>, vector<4x384xf32>
    tpu.vector_store %arg5[%c144, %c0_121], %109 {strides = array<i32>} : memref<196x384xf32, #tpu.memory_space<vmem>>, vector<4x384xf32>,
    %c0_122 = arith.constant 0 : index
    %c0_123 = arith.constant 0 : index
    %c122 = arith.constant 122 : index
    %111 = vector.load %arg1[%c0_122, %c0_123, %c122] : memref<1x4x640xf32, #tpu.memory_space<vmem>>, vector<1x4x384xf32>
    %112 = vector.shape_cast %111 : vector<1x4x384xf32> to vector<4x384xf32>
    %c148 = arith.constant 148 : index
    %c0_124 = arith.constant 0 : index
    %113 = vector.load %arg5[%c148, %c0_124] : memref<196x384xf32, #tpu.memory_space<vmem>>, vector<4x384xf32>
    tpu.vector_store %arg5[%c148, %c0_124], %112 {strides = array<i32>} : memref<196x384xf32, #tpu.memory_space<vmem>>, vector<4x384xf32>,
    %c0_125 = arith.constant 0 : index
    %c0_126 = arith.constant 0 : index
    %c123 = arith.constant 123 : index
    %114 = vector.load %arg1[%c0_125, %c0_126, %c123] : memref<1x4x640xf32, #tpu.memory_space<vmem>>, vector<1x4x384xf32>
    %115 = vector.shape_cast %114 : vector<1x4x384xf32> to vector<4x384xf32>
    %c152 = arith.constant 152 : index
    %c0_127 = arith.constant 0 : index
    %116 = vector.load %arg5[%c152, %c0_127] : memref<196x384xf32, #tpu.memory_space<vmem>>, vector<4x384xf32>
    tpu.vector_store %arg5[%c152, %c0_127], %115 {strides = array<i32>} : memref<196x384xf32, #tpu.memory_space<vmem>>, vector<4x384xf32>,
    %c0_128 = arith.constant 0 : index
    %c0_129 = arith.constant 0 : index
    %c124_130 = arith.constant 124 : index
    %117 = vector.load %arg1[%c0_128, %c0_129, %c124_130] : memref<1x4x640xf32, #tpu.memory_space<vmem>>, vector<1x4x384xf32>
    %118 = vector.shape_cast %117 : vector<1x4x384xf32> to vector<4x384xf32>
    %c156 = arith.constant 156 : index
    %c0_131 = arith.constant 0 : index
    %119 = vector.load %arg5[%c156, %c0_131] : memref<196x384xf32, #tpu.memory_space<vmem>>, vector<4x384xf32>
    tpu.vector_store %arg5[%c156, %c0_131], %118 {strides = array<i32>} : memref<196x384xf32, #tpu.memory_space<vmem>>, vector<4x384xf32>,
    %c0_132 = arith.constant 0 : index
    %c0_133 = arith.constant 0 : index
    %c125 = arith.constant 125 : index
    %120 = vector.load %arg1[%c0_132, %c0_133, %c125] : memref<1x4x640xf32, #tpu.memory_space<vmem>>, vector<1x4x384xf32>
    %121 = vector.shape_cast %120 : vector<1x4x384xf32> to vector<4x384xf32>
    %c160 = arith.constant 160 : index
    %c0_134 = arith.constant 0 : index
    %122 = vector.load %arg5[%c160, %c0_134] : memref<196x384xf32, #tpu.memory_space<vmem>>, vector<4x384xf32>
    tpu.vector_store %arg5[%c160, %c0_134], %121 {strides = array<i32>} : memref<196x384xf32, #tpu.memory_space<vmem>>, vector<4x384xf32>,
    %c0_135 = arith.constant 0 : index
    %c0_136 = arith.constant 0 : index
    %c126 = arith.constant 126 : index
    %123 = vector.load %arg1[%c0_135, %c0_136, %c126] : memref<1x4x640xf32, #tpu.memory_space<vmem>>, vector<1x4x384xf32>
    %124 = vector.shape_cast %123 : vector<1x4x384xf32> to vector<4x384xf32>
    %c164 = arith.constant 164 : index
    %c0_137 = arith.constant 0 : index
    %125 = vector.load %arg5[%c164, %c0_137] : memref<196x384xf32, #tpu.memory_space<vmem>>, vector<4x384xf32>
    tpu.vector_store %arg5[%c164, %c0_137], %124 {strides = array<i32>} : memref<196x384xf32, #tpu.memory_space<vmem>>, vector<4x384xf32>,
    %c0_138 = arith.constant 0 : index
    %c0_139 = arith.constant 0 : index
    %c144_140 = arith.constant 144 : index
    %126 = vector.load %arg1[%c0_138, %c0_139, %c144_140] : memref<1x4x640xf32, #tpu.memory_space<vmem>>, vector<1x4x384xf32>
    %127 = vector.shape_cast %126 : vector<1x4x384xf32> to vector<4x384xf32>
    %c168 = arith.constant 168 : index
    %c0_141 = arith.constant 0 : index
    %128 = vector.load %arg5[%c168, %c0_141] : memref<196x384xf32, #tpu.memory_space<vmem>>, vector<4x384xf32>
    tpu.vector_store %arg5[%c168, %c0_141], %127 {strides = array<i32>} : memref<196x384xf32, #tpu.memory_space<vmem>>, vector<4x384xf32>,
    %c0_142 = arith.constant 0 : index
    %c0_143 = arith.constant 0 : index
    %c145 = arith.constant 145 : index
    %129 = vector.load %arg1[%c0_142, %c0_143, %c145] : memref<1x4x640xf32, #tpu.memory_space<vmem>>, vector<1x4x384xf32>
    %130 = vector.shape_cast %129 : vector<1x4x384xf32> to vector<4x384xf32>
    %c172 = arith.constant 172 : index
    %c0_144 = arith.constant 0 : index
    %131 = vector.load %arg5[%c172, %c0_144] : memref<196x384xf32, #tpu.memory_space<vmem>>, vector<4x384xf32>
    tpu.vector_store %arg5[%c172, %c0_144], %130 {strides = array<i32>} : memref<196x384xf32, #tpu.memory_space<vmem>>, vector<4x384xf32>,
    %c0_145 = arith.constant 0 : index
    %c0_146 = arith.constant 0 : index
    %c146 = arith.constant 146 : index
    %132 = vector.load %arg1[%c0_145, %c0_146, %c146] : memref<1x4x640xf32, #tpu.memory_space<vmem>>, vector<1x4x384xf32>
    %133 = vector.shape_cast %132 : vector<1x4x384xf32> to vector<4x384xf32>
    %c176 = arith.constant 176 : index
    %c0_147 = arith.constant 0 : index
    %134 = vector.load %arg5[%c176, %c0_147] : memref<196x384xf32, #tpu.memory_space<vmem>>, vector<4x384xf32>
    tpu.vector_store %arg5[%c176, %c0_147], %133 {strides = array<i32>} : memref<196x384xf32, #tpu.memory_space<vmem>>, vector<4x384xf32>,
    %c0_148 = arith.constant 0 : index
    %c0_149 = arith.constant 0 : index
    %c147 = arith.constant 147 : index
    %135 = vector.load %arg1[%c0_148, %c0_149, %c147] : memref<1x4x640xf32, #tpu.memory_space<vmem>>, vector<1x4x384xf32>
    %136 = vector.shape_cast %135 : vector<1x4x384xf32> to vector<4x384xf32>
    %c180 = arith.constant 180 : index
    %c0_150 = arith.constant 0 : index
    %137 = vector.load %arg5[%c180, %c0_150] : memref<196x384xf32, #tpu.memory_space<vmem>>, vector<4x384xf32>
    tpu.vector_store %arg5[%c180, %c0_150], %136 {strides = array<i32>} : memref<196x384xf32, #tpu.memory_space<vmem>>, vector<4x384xf32>,
    %c0_151 = arith.constant 0 : index
    %c0_152 = arith.constant 0 : index
    %c148_153 = arith.constant 148 : index
    %138 = vector.load %arg1[%c0_151, %c0_152, %c148_153] : memref<1x4x640xf32, #tpu.memory_space<vmem>>, vector<1x4x384xf32>
    %139 = vector.shape_cast %138 : vector<1x4x384xf32> to vector<4x384xf32>
    %c184 = arith.constant 184 : index
    %c0_154 = arith.constant 0 : index
    %140 = vector.load %arg5[%c184, %c0_154] : memref<196x384xf32, #tpu.memory_space<vmem>>, vector<4x384xf32>
    tpu.vector_store %arg5[%c184, %c0_154], %139 {strides = array<i32>} : memref<196x384xf32, #tpu.memory_space<vmem>>, vector<4x384xf32>,
    %c0_155 = arith.constant 0 : index
    %c0_156 = arith.constant 0 : index
    %c149 = arith.constant 149 : index
    %141 = vector.load %arg1[%c0_155, %c0_156, %c149] : memref<1x4x640xf32, #tpu.memory_space<vmem>>, vector<1x4x384xf32>
    %142 = vector.shape_cast %141 : vector<1x4x384xf32> to vector<4x384xf32>
    %c188 = arith.constant 188 : index
    %c0_157 = arith.constant 0 : index
    %143 = vector.load %arg5[%c188, %c0_157] : memref<196x384xf32, #tpu.memory_space<vmem>>, vector<4x384xf32>
    tpu.vector_store %arg5[%c188, %c0_157], %142 {strides = array<i32>} : memref<196x384xf32, #tpu.memory_space<vmem>>, vector<4x384xf32>,
    %c0_158 = arith.constant 0 : index
    %c0_159 = arith.constant 0 : index
    %c150 = arith.constant 150 : index
    %144 = vector.load %arg1[%c0_158, %c0_159, %c150] : memref<1x4x640xf32, #tpu.memory_space<vmem>>, vector<1x4x384xf32>
    %145 = vector.shape_cast %144 : vector<1x4x384xf32> to vector<4x384xf32>
    %c192 = arith.constant 192 : index
    %c0_160 = arith.constant 0 : index
    %146 = vector.load %arg5[%c192, %c0_160] : memref<196x384xf32, #tpu.memory_space<vmem>>, vector<4x384xf32>
    tpu.vector_store %arg5[%c192, %c0_160], %145 {strides = array<i32>} : memref<196x384xf32, #tpu.memory_space<vmem>>, vector<4x384xf32>,
    %c0_161 = arith.constant 0 : index
    %c0_162 = arith.constant 0 : index
    %147 = vector.load %arg2[%c0_161, %c0_162] : memref<32x196xf32, #tpu.memory_space<vmem>>, vector<32x196xf32>
    %c0_163 = arith.constant 0 : index
    %c0_164 = arith.constant 0 : index
    %148 = vector.load %arg5[%c0_163, %c0_164] : memref<196x384xf32, #tpu.memory_space<vmem>>, vector<196x384xf32>
    %cst = arith.constant dense<0.000000e+00> : vector<32x384xf32>
    %149 = tpu.matmul %147, %148, %cst {dimension_numbers = #tpu.dot_dimension_numbers<[1], [0], [0], [1], [0, 0, 1, 1], [], []>} : vector<32x196xf32>, vector<196x384xf32>, vector<32x384xf32> -> vector<32x384xf32>
    %c0_165 = arith.constant 0 : index
    %c0_166 = arith.constant 0 : index
    %150 = vector.load %arg3[%c0_165, %c0_166] : memref<32x1xf32, #tpu.memory_space<vmem>>, vector<32x1xf32>
    %151 = vector.broadcast %150 : vector<32x1xf32> to vector<32x384xf32>
    %152 = arith.addf %149, %151 : vector<32x384xf32>
    %c0_167 = arith.constant 0 : index
    %c0_168 = arith.constant 0 : index
    %c0_169 = arith.constant 0 : index
    %153 = vector.load %arg4[%c0_167, %c0_168, %c0_169] : memref<1x32x384xf32, #tpu.memory_space<vmem>>, vector<1x32x384xf32>
    %154 = vector.shape_cast %153 : vector<1x32x384xf32> to vector<32x384xf32>
    %155 = vector.shape_cast %152 : vector<32x384xf32> to vector<1x32x384xf32>
    tpu.vector_store %arg4[%c0_167, %c0_168, %c0_169], %155 {strides = array<i32>} : memref<1x32x384xf32, #tpu.memory_space<vmem>>, vector<1x32x384xf32>,
    return
  }
  func.func @transform_0(%arg0: i32) -> (i32, i32, i32) {
    %c0_i32 = arith.constant 0 : i32
    %c0_i32_0 = arith.constant 0 : i32
    %c0_i32_1 = arith.constant 0 : i32
    return %arg0, %c0_i32, %c0_i32_0 : i32, i32, i32
  }
  func.func @transform_1(%arg0: i32) -> (i32, i32) {
    %c0_i32 = arith.constant 0 : i32
    %c0_i32_0 = arith.constant 0 : i32
    %c0_i32_1 = arith.constant 0 : i32
    return %c0_i32, %c0_i32_0 : i32, i32
  }
  func.func @transform_2(%arg0: i32) -> (i32, i32) {
    %c0_i32 = arith.constant 0 : i32
    %c0_i32_0 = arith.constant 0 : i32
    %c0_i32_1 = arith.constant 0 : i32
    return %c0_i32, %c0_i32_0 : i32, i32
  }
  func.func @transform_3(%arg0: i32) -> (i32, i32, i32) {
    %c0_i32 = arith.constant 0 : i32
    %c0_i32_0 = arith.constant 0 : i32
    %c0_i32_1 = arith.constant 0 : i32
    return %arg0, %c0_i32, %c0_i32_0 : i32, i32, i32
  }
}

</mosaic_0001>

<llo_original>
// kernel: tpu_custom_call.1
$region0: #{tpu_custom_call.1}
  #allocation0 [shape = 'u32[]', space=smem, size = 0x4, offset = 0x4, fixed_abs, tag = 'smem constant byte address 0x4 - core index']
  #allocation1 [shape = 'u32[144,128]{1,0:T(1,128)}', space=vmem, size = 0x12000, scoped, tag = 'internal scratch']
  #allocation2 [shape = 'f32[196,384]{1,0:T(8,128)}', space=vmem, size = 0x4b000, scoped, tag = 'scratch operand']
  %s0 = inlined_call_operand.hbm [shape: f32[2,4,640], index: 0, kind: input, shape index: {}]
  %s1 = inlined_call_operand.hbm [shape: f32[32,196], index: 1, kind: input, shape index: {}]
  %s2 = inlined_call_operand.vmem [shape: f32[32,1], index: 2, kind: input, shape index: {}]
  %s3 = inlined_call_operand.hbm [shape: f32[2,32,384], index: 3, kind: output, shape index: {}]
  %s4 = sld [smem:[#allocation0]]
  $region53: #{tpu_custom_call.1} parent=0
    _
  %s6 = ssub.s32 1, %s4
  %s7 = scalar_select 0, %s6, %s4
  $region1: #{tpu_custom_call.1} parent=0
    #allocation3 [shape = 'u8[20480]{0}', space=vmem, size = 0x5000, scoped, tag = 'input window, operand 0']
    #allocation4 [shape = 's32[2]{0}', space=sflag, size = 0x8, scoped, tag = 'scoped memory for tpu_custom_call.1']
    #allocation5 [shape = 's32[2]{0}', space=sflag, size = 0x8, scoped, tag = 'scoped memory for tpu_custom_call.1']
    #allocation6 [shape = 'u8[32768]{0}', space=vmem, size = 0x8000, scoped, tag = 'input window, operand 1, single buffered']
    #allocation7 [shape = 's32[1]{0}', space=sflag, size = 0x4, scoped, tag = 'scoped memory for tpu_custom_call.1']
    #allocation8 [shape = 'u8[98304]{0}', space=vmem, size = 0x18000, scoped, tag = 'output window, operand 0']
    %8 = vsyncpa [#allocation4], 0
    %s9 = scalar_lea.sflag [#allocation4], 1
    %10 = vsyncpa %s9, 0
    %11 = vsyncpa [#allocation7], 0
    %12 = vsyncpa [#allocation5], 0
    %s13 = scalar_lea.sflag [#allocation5], 1
    %14 = vsyncpa %s13, 0
    loop: start=0, step=1, limit=4
    $region2: #{tpu_custom_call.1} parent=1 // loop_pre_header
      _
    $region3: #{tpu_custom_call.1} parent=1 // loop_header
      %s16 = sphi 0, %s20
      %p17 = scmp.ge.s32.totalorder %s16, 4
      %s26 = sphi 0, %s28
      %s29 = sphi 0, %s26
      %s30 = sphi 0, %s29
      %s46 = sphi 0, %s30
      %s50 = sphi 0, %s50
      %s52 = sphi 0, %s50
      %s53 = sphi 0, %s52
      %s67 = sphi 0, %s53
      %s71 = sphi 0, %s71
      %s73 = sphi 0, %s71
      %s74 = sphi 0, %s73
      %s88 = sphi 0, %s74
      %s94 = sphi 0, %s96
      %s97 = sphi 0, %s94
      %s98 = sphi 0, %s97
      %s114 = sphi 0, %s98
    $region4: #{tpu_custom_call.1} parent=1 // loop_header_branch
      %19 = sbr.rel (%p17) target = $region8
    $region5: #{tpu_custom_call.1} parent=1 // loop_body
      %s21 = ssub.s32 %s16, 1
      %s22 = ssub.s32 %s16, 2
      %s23 = sadd.s32 %s16, 1
      %s24 = ssub.s32 %s16, %s23
      %p25 = scmp.eq.s32.totalorder %s24, 0
      %s27 = sadd.s32 %s26, 1
      %s28 = scalar_select %p25, %s26, %s27
      %p31 = pneg %p25
      %p32 = scmp.eq.s32.totalorder %s16, 1
      %p33 = por %p31, %p32
      %p34 = scmp.ne.s32.totalorder %s26, %s29
      %p35 = scmp.eq.s32.totalorder %s16, 0
      %p36 = por %p34, %p35
      %p37 = scmp.ne.s32.totalorder %s26, %s29
      %p38 = scmp.eq.s32.totalorder %s21, 1
      %p39 = por %p37, %p38
      %p40 = scmp.ne.s32.totalorder %s29, %s30
      %p41 = scmp.eq.s32.totalorder %s21, 0
      %p42 = por %p40, %p41
      %p43 = scmp.ne.s32.totalorder %s29, %s30
      %p44 = scmp.eq.s32.totalorder %s22, 1
      %p45 = por %p43, %p44
      %p47 = scmp.ne.s32.totalorder %s30, %s46
      %p48 = scmp.eq.s32.totalorder %s22, 0
      %p49 = por %p47, %p48
      %s51 = sadd.s32 %s50, 1
      %p54 = scmp.eq.s32.totalorder %s16, 1
      %p55 = scmp.ne.s32.totalorder %s50, %s52
      %p56 = scmp.eq.s32.totalorder %s16, 0
      %p57 = por %p55, %p56
      %p58 = scmp.ne.s32.totalorder %s50, %s52
      %p59 = scmp.eq.s32.totalorder %s21, 1
      %p60 = por %p58, %p59
      %p61 = scmp.ne.s32.totalorder %s52, %s53
      %p62 = scmp.eq.s32.totalorder %s21, 0
      %p63 = por %p61, %p62
      %p64 = scmp.ne.s32.totalorder %s52, %s53
      %p65 = scmp.eq.s32.totalorder %s22, 1
      %p66 = por %p64, %p65
      %p68 = scmp.ne.s32.totalorder %s53, %s67
      %p69 = scmp.eq.s32.totalorder %s22, 0
      %p70 = por %p68, %p69
      %s72 = sadd.s32 %s71, 1
      %p75 = scmp.eq.s32.totalorder %s16, 1
      %p76 = scmp.ne.s32.totalorder %s71, %s73
      %p77 = scmp.eq.s32.totalorder %s16, 0
      %p78 = por %p76, %p77
      %p79 = scmp.ne.s32.totalorder %s71, %s73
      %p80 = scmp.eq.s32.totalorder %s21, 1
      %p81 = por %p79, %p80
      %p82 = scmp.ne.s32.totalorder %s73, %s74
      %p83 = scmp.eq.s32.totalorder %s21, 0
      %p84 = por %p82, %p83
      %p85 = scmp.ne.s32.totalorder %s73, %s74
      %p86 = scmp.eq.s32.totalorder %s22, 1
      %p87 = por %p85, %p86
      %p89 = scmp.ne.s32.totalorder %s74, %s88
      %p90 = scmp.eq.s32.totalorder %s22, 0
      %p91 = por %p89, %p90
      %s92 = ssub.s32 %s16, %s23
      %p93 = scmp.eq.s32.totalorder %s92, 0
      %s95 = sadd.s32 %s94, 1
      %s96 = scalar_select %p93, %s94, %s95
      %p99 = pneg %p93
      %p100 = scmp.eq.s32.totalorder %s16, 1
      %p101 = por %p99, %p100
      %p102 = scmp.ne.s32.totalorder %s94, %s97
      %p103 = scmp.eq.s32.totalorder %s16, 0
      %p104 = por %p102, %p103
      %p105 = scmp.ne.s32.totalorder %s94, %s97
      %p106 = scmp.eq.s32.totalorder %s21, 1
      %p107 = por %p105, %p106
      %p108 = scmp.ne.s32.totalorder %s97, %s98
      %p109 = scmp.eq.s32.totalorder %s21, 0
      %p110 = por %p108, %p109
      %p111 = scmp.ne.s32.totalorder %s97, %s98
      %p112 = scmp.eq.s32.totalorder %s22, 1
      %p113 = por %p111, %p112
      %p115 = scmp.ne.s32.totalorder %s98, %s114
      %p116 = scmp.eq.s32.totalorder %s22, 0
      %p117 = por %p115, %p116
      %p118 = scmp.le.s32.totalorder 1, %s16
      %p119 = scmp.lt.s32.totalorder %s16, 3
      %p120 = pnand %p118, %p119
      %p121 = pneg %p120
      // Predicated region
      $region9: #{tpu_custom_call.1} parent=5 // pred_check
        _
      $region10: #{tpu_custom_call.1} parent=5 // pred_check_branch
        %123 = sbr.rel (%p120) target = $region12
      $region11: #{tpu_custom_call.1} parent=5 // pred_region
        %s124 = ssub.s32 %s16, 1
        // Predicated region
        $region13: #{tpu_custom_call.1} parent=11 // pred_check
          %p125 = pneg %p63
        $region14: #{tpu_custom_call.1} parent=11 // pred_check_branch
          %127 = sbr.rel (%p125) target = $region16
        $region15: #{tpu_custom_call.1} parent=11 // pred_region
          %s129 = ssub.s32 1024, 1024
          %130 = vsyncadd [#allocation7], %s129
          %s131 = sshll.u32 [#allocation6], 4
          %s132 = int_to_ptr.vmem [resolvable:$true] %s131
          %137 = dma.hbm_to_vmem [thread:$0]  %s1, 1024, %s132, [#allocation7], 256, 256, 16
        $region16: #{tpu_custom_call.1} parent=11 // pred_fallthru
          _
        // Predicated region
        $region17: #{tpu_custom_call.1} parent=11 // pred_check
          %p138 = pneg %p84
        $region18: #{tpu_custom_call.1} parent=11 // pred_check_branch
          %140 = sbr.rel (%p138) target = $region20
        $region19: #{tpu_custom_call.1} parent=11 // pred_region
          _
        $region20: #{tpu_custom_call.1} parent=11 // pred_fallthru
          _
      $region12: #{tpu_custom_call.1} parent=5 // pred_fallthru
        _
      %p141 = scmp.lt.s32.totalorder %s16, 2
      // Predicated region
      $region21: #{tpu_custom_call.1} parent=5 // pred_check
        %p142 = pneg %p141
      $region22: #{tpu_custom_call.1} parent=5 // pred_check_branch
        %144 = sbr.rel (%p142) target = $region24
      $region23: #{tpu_custom_call.1} parent=5 // pred_region
        // Predicated region
        $region25: #{tpu_custom_call.1} parent=23 // pred_check
          %p145 = pneg %p36
        $region26: #{tpu_custom_call.1} parent=23 // pred_check_branch
          %147 = sbr.rel (%p145) target = $region28
        $region27: #{tpu_custom_call.1} parent=23 // pred_region
          %s148 = sand.u32 %s26, 1
          %s149 = scalar_lea.sflag [#allocation4], %s148
          %s150 = sand.u32 %s26, 1
          %s151 = smul.addr %s150, 20
          %s152 = scalar_lea.vmem [#allocation3], %s151
          %s154 = ssub.s32 320, 320
          %155 = vsyncadd %s149, %s154
          %s156 = smul.addr %s16, 5
          %s157 = smul.addr %s156, 64
          %s158 = scalar_lea.hbm %s0, %s157
          %s160 = sshll.u32 %s152, 4
          %s161 = int_to_ptr.vmem [resolvable:$true] %s160
          %163 = dma.hbm_to_vmem [thread:$0]  %s158, 320, %s161, %s149
        $region28: #{tpu_custom_call.1} parent=23 // pred_fallthru
          _
      $region24: #{tpu_custom_call.1} parent=5 // pred_fallthru
        _
      %p164 = scmp.le.s32.totalorder 1, %s16
      %p165 = scmp.lt.s32.totalorder %s16, 3
      %p166 = pnand %p164, %p165
      %p167 = pneg %p166
      // Predicated region
      $region29: #{tpu_custom_call.1} parent=5 // pred_check
        _
      $region30: #{tpu_custom_call.1} parent=5 // pred_check_branch
        %169 = sbr.rel (%p166) target = $region32
      $region31: #{tpu_custom_call.1} parent=5 // pred_region
        %s170 = ssub.s32 %s16, 1
        %s171 = sand.u32 %s29, 1
        %s172 = scalar_lea.sflag [#allocation4], %s171
        %s173 = sand.u32 %s29, 1
        %s174 = smul.addr %s173, 20
        %s175 = scalar_lea.vmem [#allocation3], %s174
        // Predicated region
        $region33: #{tpu_custom_call.1} parent=31 // pred_check
          %p176 = pneg %p42
        $region34: #{tpu_custom_call.1} parent=31 // pred_check_branch
          %178 = sbr.rel (%p176) target = $region36
        $region35: #{tpu_custom_call.1} parent=31 // pred_region
          %179 = dma.done %s172, 320
        $region36: #{tpu_custom_call.1} parent=31 // pred_fallthru
          _
        // Predicated region
        $region37: #{tpu_custom_call.1} parent=31 // pred_check
          %p180 = pneg %p63
        $region38: #{tpu_custom_call.1} parent=31 // pred_check_branch
          %182 = sbr.rel (%p180) target = $region40
        $region39: #{tpu_custom_call.1} parent=31 // pred_region
          %183 = dma.done [#allocation7], 1024
        $region40: #{tpu_custom_call.1} parent=31 // pred_fallthru
          _
        %s184 = sand.u32 %s29, 1
        %s185 = scalar_lea.sflag [#allocation4], %s184
        %s186 = sand.u32 %s29, 1
        %s187 = smul.addr %s186, 20
        %s188 = scalar_lea.vmem [#allocation3], %s187
        %p189 = pneg %p42
        %p190 = pneg %p39
        %p191 = pneg %p63
        %p192 = pneg %p60
        %p193 = pneg %p84
        %p194 = pneg %p81
        %p195 = pneg %p110
        %p196 = pneg %p107
        %s197 = sand.u32 %s97, 1
        %s198 = scalar_lea.sflag [#allocation5], %s197
        %s199 = sand.u32 %s97, 1
        %s200 = smul.addr %s199, 96
        %s201 = scalar_lea.vmem [#allocation8], %s200
        %v202 = vld [vmem:[%s175] sm:$0xff]
        %v203 = vld [vmem:[%s175 + $0x8] sm:$0xf]
        %v205 = vcombine.high %v202, %v202
        %207 = vst [vmem:[#allocation2] sm:$0xf] %v202
        %208 = vst [vmem:[#allocation2 + $0x8] sm:$0xf] %v205
        %209 = vst [vmem:[#allocation2 + $0x10] sm:$0xf] %v203
        %v210 = vld [vmem:[%s175] sm:$0xff]
        %v211 = vld [vmem:[%s175 + $0x8] sm:$0xff]
        %v214 = vcombine.low %v210, %v210
        %v215 = vcombine.low %v211, %v211
        %216 = vrot.lane.b32.xlu0 %v214, 127
        %v217 = vpop.permute.xlu0 %216
        %218 = vrot.lane.b32.xlu0 %v210, 127
        %v219 = vpop.permute.xlu0 %218
        %220 = vrot.lane.b32.xlu0 %v215, 127
        %v221 = vpop.permute.xlu0 %220
        %222 = vrot.lane.b32.xlu0 %v211, 127
        %v223 = vpop.permute.xlu0 %222
        %vm224 = vcmask 1039360
        %v225 = vsel %vm224, %v217, %v219
        %v226 = vsel %vm224, %v219, %v221
        %v227 = vsel %vm224, %v221, %v223
        %231 = vst [vmem:[#allocation2] sm:$0xf0] %v225
        %232 = vst [vmem:[#allocation2 + $0x8] sm:$0xf0] %v226
        %233 = vst [vmem:[#allocation2 + $0x10] sm:$0xf0] %v227
        %v234 = vld [vmem:[%s175] sm:$0xff]
        %v235 = vld [vmem:[%s175 + $0x8] sm:$0xff]
        %v238 = vcombine.high %v234, %v234
        %v239 = vcombine.high %v235, %v235
        %240 = vrot.lane.b32.xlu0 %v234, 126
        %v241 = vpop.permute.xlu0 %240
        %242 = vrot.lane.b32.xlu0 %v238, 126
        %v243 = vpop.permute.xlu0 %242
        %244 = vrot.lane.b32.xlu0 %v235, 126
        %v245 = vpop.permute.xlu0 %244
        %246 = vrot.lane.b32.xlu0 %v239, 126
        %v247 = vpop.permute.xlu0 %246
        %vm248 = vcmask 1031168
        %v249 = vsel %vm248, %v241, %v243
        %v250 = vsel %vm248, %v243, %v245
        %v251 = vsel %vm248, %v245, %v247
        %255 = vst [vmem:[#allocation2 + $0x18] sm:$0xf] %v249
        %256 = vst [vmem:[#allocation2 + $0x20] sm:$0xf] %v250
        %257 = vst [vmem:[#allocation2 + $0x28] sm:$0xf] %v251
        %v258 = vld [vmem:[%s175] sm:$0xff]
        %v259 = vld [vmem:[%s175 + $0x8] sm:$0xff]
        %v262 = vcombine.low %v258, %v258
        %v263 = vcombine.low %v259, %v259
        %264 = vrot.lane.b32.xlu0 %v262, 125
        %v265 = vpop.permute.xlu0 %264
        %266 = vrot.lane.b32.xlu0 %v258, 125
        %v267 = vpop.permute.xlu0 %266
        %268 = vrot.lane.b32.xlu0 %v263, 125
        %v269 = vpop.permute.xlu0 %268
        %270 = vrot.lane.b32.xlu0 %v259, 125
        %v271 = vpop.permute.xlu0 %270
        %vm272 = vcmask 1022976
        %v273 = vsel %vm272, %v265, %v267
        %v274 = vsel %vm272, %v267, %v269
        %v275 = vsel %vm272, %v269, %v271
        %279 = vst [vmem:[#allocation2 + $0x18] sm:$0xf0] %v273
        %280 = vst [vmem:[#allocation2 + $0x20] sm:$0xf0] %v274
        %281 = vst [vmem:[#allocation2 + $0x28] sm:$0xf0] %v275
        %v282 = vld [vmem:[%s175] sm:$0xff]
        %v283 = vld [vmem:[%s175 + $0x8] sm:$0xff]
        %v286 = vcombine.high %v282, %v282
        %v287 = vcombine.high %v283, %v283
        %288 = vrot.lane.b32.xlu0 %v282, 124
        %v289 = vpop.permute.xlu0 %288
        %290 = vrot.lane.b32.xlu0 %v286, 124
        %v291 = vpop.permute.xlu0 %290
        %292 = vrot.lane.b32.xlu0 %v283, 124
        %v293 = vpop.permute.xlu0 %292
        %294 = vrot.lane.b32.xlu0 %v287, 124
        %v295 = vpop.permute.xlu0 %294
        %vm296 = vcmask 1014784
        %v297 = vsel %vm296, %v289, %v291
        %v298 = vsel %vm296, %v291, %v293
        %v299 = vsel %vm296, %v293, %v295
        %303 = vst [vmem:[#allocation2 + $0x30] sm:$0xf] %v297
        %304 = vst [vmem:[#allocation2 + $0x38] sm:$0xf] %v298
        %305 = vst [vmem:[#allocation2 + $0x40] sm:$0xf] %v299
        %v306 = vld [vmem:[%s175] sm:$0xff]
        %v307 = vld [vmem:[%s175 + $0x8] sm:$0xff]
        %v310 = vcombine.low %v306, %v306
        %v311 = vcombine.low %v307, %v307
        %312 = vrot.lane.b32.xlu0 %v310, 123
        %v313 = vpop.permute.xlu0 %312
        %314 = vrot.lane.b32.xlu0 %v306, 123
        %v315 = vpop.permute.xlu0 %314
        %316 = vrot.lane.b32.xlu0 %v311, 123
        %v317 = vpop.permute.xlu0 %316
        %318 = vrot.lane.b32.xlu0 %v307, 123
        %v319 = vpop.permute.xlu0 %318
        %vm320 = vcmask 1006592
        %v321 = vsel %vm320, %v313, %v315
        %v322 = vsel %vm320, %v315, %v317
        %v323 = vsel %vm320, %v317, %v319
        %327 = vst [vmem:[#allocation2 + $0x30] sm:$0xf0] %v321
        %328 = vst [vmem:[#allocation2 + $0x38] sm:$0xf0] %v322
        %329 = vst [vmem:[#allocation2 + $0x40] sm:$0xf0] %v323
        %v330 = vld [vmem:[%s175] sm:$0xff]
        %v331 = vld [vmem:[%s175 + $0x8] sm:$0xff]
        %v334 = vcombine.high %v330, %v330
        %v335 = vcombine.high %v331, %v331
        %336 = vrot.lane.b32.xlu0 %v330, 122
        %v337 = vpop.permute.xlu0 %336
        %338 = vrot.lane.b32.xlu0 %v334, 122
        %v339 = vpop.permute.xlu0 %338
        %340 = vrot.lane.b32.xlu0 %v331, 122
        %v341 = vpop.permute.xlu0 %340
        %342 = vrot.lane.b32.xlu0 %v335, 122
        %v343 = vpop.permute.xlu0 %342
        %vm344 = vcmask 998400
        %v345 = vsel %vm344, %v337, %v339
        %v346 = vsel %vm344, %v339, %v341
        %v347 = vsel %vm344, %v341, %v343
        %351 = vst [vmem:[#allocation2 + $0x48] sm:$0xf] %v345
        %352 = vst [vmem:[#allocation2 + $0x50] sm:$0xf] %v346
        %353 = vst [vmem:[#allocation2 + $0x58] sm:$0xf] %v347
        %v354 = vld [vmem:[%s175] sm:$0xff]
        %v355 = vld [vmem:[%s175 + $0x8] sm:$0xff]
        %v358 = vcombine.low %v354, %v354
        %v359 = vcombine.low %v355, %v355
        %360 = vrot.lane.b32.xlu0 %v358, 104
        %v361 = vpop.permute.xlu0 %360
        %362 = vrot.lane.b32.xlu0 %v354, 104
        %v363 = vpop.permute.xlu0 %362
        %364 = vrot.lane.b32.xlu0 %v359, 104
        %v365 = vpop.permute.xlu0 %364
        %366 = vrot.lane.b32.xlu0 %v355, 104
        %v367 = vpop.permute.xlu0 %366
        %vm368 = vcmask 850944
        %v369 = vsel %vm368, %v361, %v363
        %v370 = vsel %vm368, %v363, %v365
        %v371 = vsel %vm368, %v365, %v367
        %375 = vst [vmem:[#allocation2 + $0x48] sm:$0xf0] %v369
        %376 = vst [vmem:[#allocation2 + $0x50] sm:$0xf0] %v370
        %377 = vst [vmem:[#allocation2 + $0x58] sm:$0xf0] %v371
        %v378 = vld [vmem:[%s175] sm:$0xff]
        %v379 = vld [vmem:[%s175 + $0x8] sm:$0xff]
        %v382 = vcombine.high %v378, %v378
        %v383 = vcombine.high %v379, %v379
        %384 = vrot.lane.b32.xlu0 %v378, 103
        %v385 = vpop.permute.xlu0 %384
        %386 = vrot.lane.b32.xlu0 %v382, 103
        %v387 = vpop.permute.xlu0 %386
        %388 = vrot.lane.b32.xlu0 %v379, 103
        %v389 = vpop.permute.xlu0 %388
        %390 = vrot.lane.b32.xlu0 %v383, 103
        %v391 = vpop.permute.xlu0 %390
        %vm392 = vcmask 842752
        %v393 = vsel %vm392, %v385, %v387
        %v394 = vsel %vm392, %v387, %v389
        %v395 = vsel %vm392, %v389, %v391
        %399 = vst [vmem:[#allocation2 + $0x60] sm:$0xf] %v393
        %400 = vst [vmem:[#allocation2 + $0x68] sm:$0xf] %v394
        %401 = vst [vmem:[#allocation2 + $0x70] sm:$0xf] %v395
        %v402 = vld [vmem:[%s175] sm:$0xff]
        %v403 = vld [vmem:[%s175 + $0x8] sm:$0xff]
        %v406 = vcombine.low %v402, %v402
        %v407 = vcombine.low %v403, %v403
        %408 = vrot.lane.b32.xlu0 %v406, 102
        %v409 = vpop.permute.xlu0 %408
        %410 = vrot.lane.b32.xlu0 %v402, 102
        %v411 = vpop.permute.xlu0 %410
        %412 = vrot.lane.b32.xlu0 %v407, 102
        %v413 = vpop.permute.xlu0 %412
        %414 = vrot.lane.b32.xlu0 %v403, 102
        %v415 = vpop.permute.xlu0 %414
        %vm416 = vcmask 834560
        %v417 = vsel %vm416, %v409, %v411
        %v418 = vsel %vm416, %v411, %v413
        %v419 = vsel %vm416, %v413, %v415
        %423 = vst [vmem:[#allocation2 + $0x60] sm:$0xf0] %v417
        %424 = vst [vmem:[#allocation2 + $0x68] sm:$0xf0] %v418
        %425 = vst [vmem:[#allocation2 + $0x70] sm:$0xf0] %v419
        %v426 = vld [vmem:[%s175] sm:$0xff]
        %v427 = vld [vmem:[%s175 + $0x8] sm:$0xff]
        %v430 = vcombine.high %v426, %v426
        %v431 = vcombine.high %v427, %v427
        %432 = vrot.lane.b32.xlu0 %v426, 101
        %v433 = vpop.permute.xlu0 %432
        %434 = vrot.lane.b32.xlu0 %v430, 101
        %v435 = vpop.permute.xlu0 %434
        %436 = vrot.lane.b32.xlu0 %v427, 101
        %v437 = vpop.permute.xlu0 %436
        %438 = vrot.lane.b32.xlu0 %v431, 101
        %v439 = vpop.permute.xlu0 %438
        %vm440 = vcmask 826368
        %v441 = vsel %vm440, %v433, %v435
        %v442 = vsel %vm440, %v435, %v437
        %v443 = vsel %vm440, %v437, %v439
        %447 = vst [vmem:[#allocation2 + $0x78] sm:$0xf] %v441
        %448 = vst [vmem:[#allocation2 + $0x80] sm:$0xf] %v442
        %449 = vst [vmem:[#allocation2 + $0x88] sm:$0xf] %v443
        %v450 = vld [vmem:[%s175] sm:$0xff]
        %v451 = vld [vmem:[%s175 + $0x8] sm:$0xff]
        %v454 = vcombine.low %v450, %v450
        %v455 = vcombine.low %v451, %v451
        %456 = vrot.lane.b32.xlu0 %v454, 100
        %v457 = vpop.permute.xlu0 %456
        %458 = vrot.lane.b32.xlu0 %v450, 100
        %v459 = vpop.permute.xlu0 %458
        %460 = vrot.lane.b32.xlu0 %v455, 100
        %v461 = vpop.permute.xlu0 %460
        %462 = vrot.lane.b32.xlu0 %v451, 100
        %v463 = vpop.permute.xlu0 %462
        %vm464 = vcmask 818176
        %v465 = vsel %vm464, %v457, %v459
        %v466 = vsel %vm464, %v459, %v461
        %v467 = vsel %vm464, %v461, %v463
        %471 = vst [vmem:[#allocation2 + $0x78] sm:$0xf0] %v465
        %472 = vst [vmem:[#allocation2 + $0x80] sm:$0xf0] %v466
        %473 = vst [vmem:[#allocation2 + $0x88] sm:$0xf0] %v467
        %v474 = vld [vmem:[%s175] sm:$0xff]
        %v475 = vld [vmem:[%s175 + $0x8] sm:$0xff]
        %v478 = vcombine.high %v474, %v474
        %v479 = vcombine.high %v475, %v475
        %480 = vrot.lane.b32.xlu0 %v474, 99
        %v481 = vpop.permute.xlu0 %480
        %482 = vrot.lane.b32.xlu0 %v478, 99
        %v483 = vpop.permute.xlu0 %482
        %484 = vrot.lane.b32.xlu0 %v475, 99
        %v485 = vpop.permute.xlu0 %484
        %486 = vrot.lane.b32.xlu0 %v479, 99
        %v487 = vpop.permute.xlu0 %486
        %vm488 = vcmask 809984
        %v489 = vsel %vm488, %v481, %v483
        %v490 = vsel %vm488, %v483, %v485
        %v491 = vsel %vm488, %v485, %v487
        %495 = vst [vmem:[#allocation2 + $0x90] sm:$0xf] %v489
        %496 = vst [vmem:[#allocation2 + $0x98] sm:$0xf] %v490
        %497 = vst [vmem:[#allocation2 + $0xa0] sm:$0xf] %v491
        %v498 = vld [vmem:[%s175] sm:$0xff]
        %v499 = vld [vmem:[%s175 + $0x8] sm:$0xff]
        %v502 = vcombine.low %v498, %v498
        %v503 = vcombine.low %v499, %v499
        %504 = vrot.lane.b32.xlu0 %v502, 98
        %v505 = vpop.permute.xlu0 %504
        %506 = vrot.lane.b32.xlu0 %v498, 98
        %v507 = vpop.permute.xlu0 %506
        %508 = vrot.lane.b32.xlu0 %v503, 98
        %v509 = vpop.permute.xlu0 %508
        %510 = vrot.lane.b32.xlu0 %v499, 98
        %v511 = vpop.permute.xlu0 %510
        %vm512 = vcmask 801792
        %v513 = vsel %vm512, %v505, %v507
        %v514 = vsel %vm512, %v507, %v509
        %v515 = vsel %vm512, %v509, %v511
        %519 = vst [vmem:[#allocation2 + $0x90] sm:$0xf0] %v513
        %520 = vst [vmem:[#allocation2 + $0x98] sm:$0xf0] %v514
        %521 = vst [vmem:[#allocation2 + $0xa0] sm:$0xf0] %v515
        %v522 = vld [vmem:[%s175] sm:$0xff]
        %v523 = vld [vmem:[%s175 + $0x8] sm:$0xff]
        %v526 = vcombine.high %v522, %v522
        %v527 = vcombine.high %v523, %v523
        %528 = vrot.lane.b32.xlu0 %v522, 80
        %v529 = vpop.permute.xlu0 %528
        %530 = vrot.lane.b32.xlu0 %v526, 80
        %v531 = vpop.permute.xlu0 %530
        %532 = vrot.lane.b32.xlu0 %v523, 80
        %v533 = vpop.permute.xlu0 %532
        %534 = vrot.lane.b32.xlu0 %v527, 80
        %v535 = vpop.permute.xlu0 %534
        %vm536 = vcmask 654336
        %v537 = vsel %vm536, %v529, %v531
        %v538 = vsel %vm536, %v531, %v533
        %v539 = vsel %vm536, %v533, %v535
        %543 = vst [vmem:[#allocation2 + $0xa8] sm:$0xf] %v537
        %544 = vst [vmem:[#allocation2 + $0xb0] sm:$0xf] %v538
        %545 = vst [vmem:[#allocation2 + $0xb8] sm:$0xf] %v539
        %v546 = vld [vmem:[%s175] sm:$0xff]
        %v547 = vld [vmem:[%s175 + $0x8] sm:$0xff]
        %v550 = vcombine.low %v546, %v546
        %v551 = vcombine.low %v547, %v547
        %552 = vrot.lane.b32.xlu0 %v550, 79
        %v553 = vpop.permute.xlu0 %552
        %554 = vrot.lane.b32.xlu0 %v546, 79
        %v555 = vpop.permute.xlu0 %554
        %556 = vrot.lane.b32.xlu0 %v551, 79
        %v557 = vpop.permute.xlu0 %556
        %558 = vrot.lane.b32.xlu0 %v547, 79
        %v559 = vpop.permute.xlu0 %558
        %vm560 = vcmask 646144
        %v561 = vsel %vm560, %v553, %v555
        %v562 = vsel %vm560, %v555, %v557
        %v563 = vsel %vm560, %v557, %v559
        %567 = vst [vmem:[#allocation2 + $0xa8] sm:$0xf0] %v561
        %568 = vst [vmem:[#allocation2 + $0xb0] sm:$0xf0] %v562
        %569 = vst [vmem:[#allocation2 + $0xb8] sm:$0xf0] %v563
        %v570 = vld [vmem:[%s175] sm:$0xff]
        %v571 = vld [vmem:[%s175 + $0x8] sm:$0xff]
        %v574 = vcombine.high %v570, %v570
        %v575 = vcombine.high %v571, %v571
        %576 = vrot.lane.b32.xlu0 %v570, 78
        %v577 = vpop.permute.xlu0 %576
        %578 = vrot.lane.b32.xlu0 %v574, 78
        %v579 = vpop.permute.xlu0 %578
        %580 = vrot.lane.b32.xlu0 %v571, 78
        %v581 = vpop.permute.xlu0 %580
        %582 = vrot.lane.b32.xlu0 %v575, 78
        %v583 = vpop.permute.xlu0 %582
        %vm584 = vcmask 637952
        %v585 = vsel %vm584, %v577, %v579
        %v586 = vsel %vm584, %v579, %v581
        %v587 = vsel %vm584, %v581, %v583
        %591 = vst [vmem:[#allocation2 + $0xc0] sm:$0xf] %v585
        %592 = vst [vmem:[#allocation2 + $0xc8] sm:$0xf] %v586
        %593 = vst [vmem:[#allocation2 + $0xd0] sm:$0xf] %v587
        %v594 = vld [vmem:[%s175] sm:$0xff]
        %v595 = vld [vmem:[%s175 + $0x8] sm:$0xff]
        %v598 = vcombine.low %v594, %v594
        %v599 = vcombine.low %v595, %v595
        %600 = vrot.lane.b32.xlu0 %v598, 77
        %v601 = vpop.permute.xlu0 %600
        %602 = vrot.lane.b32.xlu0 %v594, 77
        %v603 = vpop.permute.xlu0 %602
        %604 = vrot.lane.b32.xlu0 %v599, 77
        %v605 = vpop.permute.xlu0 %604
        %606 = vrot.lane.b32.xlu0 %v595, 77
        %v607 = vpop.permute.xlu0 %606
        %vm608 = vcmask 629760
        %v609 = vsel %vm608, %v601, %v603
        %v610 = vsel %vm608, %v603, %v605
        %v611 = vsel %vm608, %v605, %v607
        %615 = vst [vmem:[#allocation2 + $0xc0] sm:$0xf0] %v609
        %616 = vst [vmem:[#allocation2 + $0xc8] sm:$0xf0] %v610
        %617 = vst [vmem:[#allocation2 + $0xd0] sm:$0xf0] %v611
        %v618 = vld [vmem:[%s175] sm:$0xff]
        %v619 = vld [vmem:[%s175 + $0x8] sm:$0xff]
        %v622 = vcombine.high %v618, %v618
        %v623 = vcombine.high %v619, %v619
        %624 = vrot.lane.b32.xlu0 %v618, 76
        %v625 = vpop.permute.xlu0 %624
        %626 = vrot.lane.b32.xlu0 %v622, 76
        %v627 = vpop.permute.xlu0 %626
        %628 = vrot.lane.b32.xlu0 %v619, 76
        %v629 = vpop.permute.xlu0 %628
        %630 = vrot.lane.b32.xlu0 %v623, 76
        %v631 = vpop.permute.xlu0 %630
        %vm632 = vcmask 621568
        %v633 = vsel %vm632, %v625, %v627
        %v634 = vsel %vm632, %v627, %v629
        %v635 = vsel %vm632, %v629, %v631
        %639 = vst [vmem:[#allocation2 + $0xd8] sm:$0xf] %v633
        %640 = vst [vmem:[#allocation2 + $0xe0] sm:$0xf] %v634
        %641 = vst [vmem:[#allocation2 + $0xe8] sm:$0xf] %v635
        %v642 = vld [vmem:[%s175] sm:$0xff]
        %v643 = vld [vmem:[%s175 + $0x8] sm:$0xff]
        %v646 = vcombine.low %v642, %v642
        %v647 = vcombine.low %v643, %v643
        %648 = vrot.lane.b32.xlu0 %v646, 75
        %v649 = vpop.permute.xlu0 %648
        %650 = vrot.lane.b32.xlu0 %v642, 75
        %v651 = vpop.permute.xlu0 %650
        %652 = vrot.lane.b32.xlu0 %v647, 75
        %v653 = vpop.permute.xlu0 %652
        %654 = vrot.lane.b32.xlu0 %v643, 75
        %v655 = vpop.permute.xlu0 %654
        %vm656 = vcmask 613376
        %v657 = vsel %vm656, %v649, %v651
        %v658 = vsel %vm656, %v651, %v653
        %v659 = vsel %vm656, %v653, %v655
        %663 = vst [vmem:[#allocation2 + $0xd8] sm:$0xf0] %v657
        %664 = vst [vmem:[#allocation2 + $0xe0] sm:$0xf0] %v658
        %665 = vst [vmem:[#allocation2 + $0xe8] sm:$0xf0] %v659
        %v666 = vld [vmem:[%s175] sm:$0xff]
        %v667 = vld [vmem:[%s175 + $0x8] sm:$0xff]
        %v670 = vcombine.high %v666, %v666
        %v671 = vcombine.high %v667, %v667
        %672 = vrot.lane.b32.xlu0 %v666, 74
        %v673 = vpop.permute.xlu0 %672
        %674 = vrot.lane.b32.xlu0 %v670, 74
        %v675 = vpop.permute.xlu0 %674
        %676 = vrot.lane.b32.xlu0 %v667, 74
        %v677 = vpop.permute.xlu0 %676
        %678 = vrot.lane.b32.xlu0 %v671, 74
        %v679 = vpop.permute.xlu0 %678
        %vm680 = vcmask 605184
        %v681 = vsel %vm680, %v673, %v675
        %v682 = vsel %vm680, %v675, %v677
        %v683 = vsel %vm680, %v677, %v679
        %687 = vst [vmem:[#allocation2 + $0xf0] sm:$0xf] %v681
        %688 = vst [vmem:[#allocation2 + $0xf8] sm:$0xf] %v682
        %689 = vst [vmem:[#allocation2 + $0x100] sm:$0xf] %v683
        %v690 = vld [vmem:[%s175] sm:$0xff]
        %v691 = vld [vmem:[%s175 + $0x8] sm:$0xff]
        %v694 = vcombine.low %v690, %v690
        %v695 = vcombine.low %v691, %v691
        %696 = vrot.lane.b32.xlu0 %v694, 56
        %v697 = vpop.permute.xlu0 %696
        %698 = vrot.lane.b32.xlu0 %v690, 56
        %v699 = vpop.permute.xlu0 %698
        %700 = vrot.lane.b32.xlu0 %v695, 56
        %v701 = vpop.permute.xlu0 %700
        %702 = vrot.lane.b32.xlu0 %v691, 56
        %v703 = vpop.permute.xlu0 %702
        %vm704 = vcmask 457728
        %v705 = vsel %vm704, %v697, %v699
        %v706 = vsel %vm704, %v699, %v701
        %v707 = vsel %vm704, %v701, %v703
        %711 = vst [vmem:[#allocation2 + $0xf0] sm:$0xf0] %v705
        %712 = vst [vmem:[#allocation2 + $0xf8] sm:$0xf0] %v706
        %713 = vst [vmem:[#allocation2 + $0x100] sm:$0xf0] %v707
        %v714 = vld [vmem:[%s175] sm:$0xff]
        %v715 = vld [vmem:[%s175 + $0x8] sm:$0xff]
        %v718 = vcombine.high %v714, %v714
        %v719 = vcombine.high %v715, %v715
        %720 = vrot.lane.b32.xlu0 %v714, 55
        %v721 = vpop.permute.xlu0 %720
        %722 = vrot.lane.b32.xlu0 %v718, 55
        %v723 = vpop.permute.xlu0 %722
        %724 = vrot.lane.b32.xlu0 %v715, 55
        %v725 = vpop.permute.xlu0 %724
        %726 = vrot.lane.b32.xlu0 %v719, 55
        %v727 = vpop.permute.xlu0 %726
        %vm728 = vcmask 449536
        %v729 = vsel %vm728, %v721, %v723
        %v730 = vsel %vm728, %v723, %v725
        %v731 = vsel %vm728, %v725, %v727
        %735 = vst [vmem:[#allocation2 + $0x108] sm:$0xf] %v729
        %736 = vst [vmem:[#allocation2 + $0x110] sm:$0xf] %v730
        %737 = vst [vmem:[#allocation2 + $0x118] sm:$0xf] %v731
        %v738 = vld [vmem:[%s175] sm:$0xff]
        %v739 = vld [vmem:[%s175 + $0x8] sm:$0xff]
        %v742 = vcombine.low %v738, %v738
        %v743 = vcombine.low %v739, %v739
        %744 = vrot.lane.b32.xlu0 %v742, 54
        %v745 = vpop.permute.xlu0 %744
        %746 = vrot.lane.b32.xlu0 %v738, 54
        %v747 = vpop.permute.xlu0 %746
        %748 = vrot.lane.b32.xlu0 %v743, 54
        %v749 = vpop.permute.xlu0 %748
        %750 = vrot.lane.b32.xlu0 %v739, 54
        %v751 = vpop.permute.xlu0 %750
        %vm752 = vcmask 441344
        %v753 = vsel %vm752, %v745, %v747
        %v754 = vsel %vm752, %v747, %v749
        %v755 = vsel %vm752, %v749, %v751
        %759 = vst [vmem:[#allocation2 + $0x108] sm:$0xf0] %v753
        %760 = vst [vmem:[#allocation2 + $0x110] sm:$0xf0] %v754
        %761 = vst [vmem:[#allocation2 + $0x118] sm:$0xf0] %v755
        %v762 = vld [vmem:[%s175] sm:$0xff]
        %v763 = vld [vmem:[%s175 + $0x8] sm:$0xff]
        %v766 = vcombine.high %v762, %v762
        %v767 = vcombine.high %v763, %v763
        %768 = vrot.lane.b32.xlu0 %v762, 53
        %v769 = vpop.permute.xlu0 %768
        %770 = vrot.lane.b32.xlu0 %v766, 53
        %v771 = vpop.permute.xlu0 %770
        %772 = vrot.lane.b32.xlu0 %v763, 53
        %v773 = vpop.permute.xlu0 %772
        %774 = vrot.lane.b32.xlu0 %v767, 53
        %v775 = vpop.permute.xlu0 %774
        %vm776 = vcmask 433152
        %v777 = vsel %vm776, %v769, %v771
        %v778 = vsel %vm776, %v771, %v773
        %v779 = vsel %vm776, %v773, %v775
        %783 = vst [vmem:[#allocation2 + $0x120] sm:$0xf] %v777
        %784 = vst [vmem:[#allocation2 + $0x128] sm:$0xf] %v778
        %785 = vst [vmem:[#allocation2 + $0x130] sm:$0xf] %v779
        %v786 = vld [vmem:[%s175] sm:$0xff]
        %v787 = vld [vmem:[%s175 + $0x8] sm:$0xff]
        %v790 = vcombine.low %v786, %v786
        %v791 = vcombine.low %v787, %v787
        %792 = vrot.lane.b32.xlu0 %v790, 52
        %v793 = vpop.permute.xlu0 %792
        %794 = vrot.lane.b32.xlu0 %v786, 52
        %v795 = vpop.permute.xlu0 %794
        %796 = vrot.lane.b32.xlu0 %v791, 52
        %v797 = vpop.permute.xlu0 %796
        %798 = vrot.lane.b32.xlu0 %v787, 52
        %v799 = vpop.permute.xlu0 %798
        %vm800 = vcmask 424960
        %v801 = vsel %vm800, %v793, %v795
        %v802 = vsel %vm800, %v795, %v797
        %v803 = vsel %vm800, %v797, %v799
        %807 = vst [vmem:[#allocation2 + $0x120] sm:$0xf0] %v801
        %808 = vst [vmem:[#allocation2 + $0x128] sm:$0xf0] %v802
        %809 = vst [vmem:[#allocation2 + $0x130] sm:$0xf0] %v803
        %v810 = vld [vmem:[%s175] sm:$0xff]
        %v811 = vld [vmem:[%s175 + $0x8] sm:$0xff]
        %v814 = vcombine.high %v810, %v810
        %v815 = vcombine.high %v811, %v811
        %816 = vrot.lane.b32.xlu0 %v810, 51
        %v817 = vpop.permute.xlu0 %816
        %818 = vrot.lane.b32.xlu0 %v814, 51
        %v819 = vpop.permute.xlu0 %818
        %820 = vrot.lane.b32.xlu0 %v811, 51
        %v821 = vpop.permute.xlu0 %820
        %822 = vrot.lane.b32.xlu0 %v815, 51
        %v823 = vpop.permute.xlu0 %822
        %vm824 = vcmask 416768
        %v825 = vsel %vm824, %v817, %v819
        %v826 = vsel %vm824, %v819, %v821
        %v827 = vsel %vm824, %v821, %v823
        %831 = vst [vmem:[#allocation2 + $0x138] sm:$0xf] %v825
        %832 = vst [vmem:[#allocation2 + $0x140] sm:$0xf] %v826
        %833 = vst [vmem:[#allocation2 + $0x148] sm:$0xf] %v827
        %v834 = vld [vmem:[%s175] sm:$0xff]
        %v835 = vld [vmem:[%s175 + $0x8] sm:$0xff]
        %v838 = vcombine.low %v834, %v834
        %v839 = vcombine.low %v835, %v835
        %840 = vrot.lane.b32.xlu0 %v838, 50
        %v841 = vpop.permute.xlu0 %840
        %842 = vrot.lane.b32.xlu0 %v834, 50
        %v843 = vpop.permute.xlu0 %842
        %844 = vrot.lane.b32.xlu0 %v839, 50
        %v845 = vpop.permute.xlu0 %844
        %846 = vrot.lane.b32.xlu0 %v835, 50
        %v847 = vpop.permute.xlu0 %846
        %vm848 = vcmask 408576
        %v849 = vsel %vm848, %v841, %v843
        %v850 = vsel %vm848, %v843, %v845
        %v851 = vsel %vm848, %v845, %v847
        %855 = vst [vmem:[#allocation2 + $0x138] sm:$0xf0] %v849
        %856 = vst [vmem:[#allocation2 + $0x140] sm:$0xf0] %v850
        %857 = vst [vmem:[#allocation2 + $0x148] sm:$0xf0] %v851
        %v858 = vld [vmem:[%s175] sm:$0xff]
        %v859 = vld [vmem:[%s175 + $0x8] sm:$0xff]
        %v862 = vcombine.high %v858, %v858
        %v863 = vcombine.high %v859, %v859
        %864 = vrot.lane.b32.xlu0 %v858, 32
        %v865 = vpop.permute.xlu0 %864
        %866 = vrot.lane.b32.xlu0 %v862, 32
        %v867 = vpop.permute.xlu0 %866
        %868 = vrot.lane.b32.xlu0 %v859, 32
        %v869 = vpop.permute.xlu0 %868
        %870 = vrot.lane.b32.xlu0 %v863, 32
        %v871 = vpop.permute.xlu0 %870
        %vm872 = vcmask 261120
        %v873 = vsel %vm872, %v865, %v867
        %v874 = vsel %vm872, %v867, %v869
        %v875 = vsel %vm872, %v869, %v871
        %879 = vst [vmem:[#allocation2 + $0x150] sm:$0xf] %v873
        %880 = vst [vmem:[#allocation2 + $0x158] sm:$0xf] %v874
        %881 = vst [vmem:[#allocation2 + $0x160] sm:$0xf] %v875
        %v882 = vld [vmem:[%s175] sm:$0xff]
        %v883 = vld [vmem:[%s175 + $0x8] sm:$0xff]
        %v886 = vcombine.low %v882, %v882
        %v887 = vcombine.low %v883, %v883
        %888 = vrot.lane.b32.xlu0 %v886, 31
        %v889 = vpop.permute.xlu0 %888
        %890 = vrot.lane.b32.xlu0 %v882, 31
        %v891 = vpop.permute.xlu0 %890
        %892 = vrot.lane.b32.xlu0 %v887, 31
        %v893 = vpop.permute.xlu0 %892
        %894 = vrot.lane.b32.xlu0 %v883, 31
        %v895 = vpop.permute.xlu0 %894
        %vm896 = vcmask 252928
        %v897 = vsel %vm896, %v889, %v891
        %v898 = vsel %vm896, %v891, %v893
        %v899 = vsel %vm896, %v893, %v895
        %903 = vst [vmem:[#allocation2 + $0x150] sm:$0xf0] %v897
        %904 = vst [vmem:[#allocation2 + $0x158] sm:$0xf0] %v898
        %905 = vst [vmem:[#allocation2 + $0x160] sm:$0xf0] %v899
        %v906 = vld [vmem:[%s175] sm:$0xff]
        %v907 = vld [vmem:[%s175 + $0x8] sm:$0xff]
        %v910 = vcombine.high %v906, %v906
        %v911 = vcombine.high %v907, %v907
        %912 = vrot.lane.b32.xlu0 %v906, 30
        %v913 = vpop.permute.xlu0 %912
        %914 = vrot.lane.b32.xlu0 %v910, 30
        %v915 = vpop.permute.xlu0 %914
        %916 = vrot.lane.b32.xlu0 %v907, 30
        %v917 = vpop.permute.xlu0 %916
        %918 = vrot.lane.b32.xlu0 %v911, 30
        %v919 = vpop.permute.xlu0 %918
        %vm920 = vcmask 244736
        %v921 = vsel %vm920, %v913, %v915
        %v922 = vsel %vm920, %v915, %v917
        %v923 = vsel %vm920, %v917, %v919
        %927 = vst [vmem:[#allocation2 + $0x168] sm:$0xf] %v921
        %928 = vst [vmem:[#allocation2 + $0x170] sm:$0xf] %v922
        %929 = vst [vmem:[#allocation2 + $0x178] sm:$0xf] %v923
        %v930 = vld [vmem:[%s175] sm:$0xff]
        %v931 = vld [vmem:[%s175 + $0x8] sm:$0xff]
        %v934 = vcombine.low %v930, %v930
        %v935 = vcombine.low %v931, %v931
        %936 = vrot.lane.b32.xlu0 %v934, 29
        %v937 = vpop.permute.xlu0 %936
        %938 = vrot.lane.b32.xlu0 %v930, 29
        %v939 = vpop.permute.xlu0 %938
        %940 = vrot.lane.b32.xlu0 %v935, 29
        %v941 = vpop.permute.xlu0 %940
        %942 = vrot.lane.b32.xlu0 %v931, 29
        %v943 = vpop.permute.xlu0 %942
        %vm944 = vcmask 236544
        %v945 = vsel %vm944, %v937, %v939
        %v946 = vsel %vm944, %v939, %v941
        %v947 = vsel %vm944, %v941, %v943
        %951 = vst [vmem:[#allocation2 + $0x168] sm:$0xf0] %v945
        %952 = vst [vmem:[#allocation2 + $0x170] sm:$0xf0] %v946
        %953 = vst [vmem:[#allocation2 + $0x178] sm:$0xf0] %v947
        %v954 = vld [vmem:[%s175] sm:$0xff]
        %v955 = vld [vmem:[%s175 + $0x8] sm:$0xff]
        %v958 = vcombine.high %v954, %v954
        %v959 = vcombine.high %v955, %v955
        %960 = vrot.lane.b32.xlu0 %v954, 28
        %v961 = vpop.permute.xlu0 %960
        %962 = vrot.lane.b32.xlu0 %v958, 28
        %v963 = vpop.permute.xlu0 %962
        %964 = vrot.lane.b32.xlu0 %v955, 28
        %v965 = vpop.permute.xlu0 %964
        %966 = vrot.lane.b32.xlu0 %v959, 28
        %v967 = vpop.permute.xlu0 %966
        %vm968 = vcmask 228352
        %v969 = vsel %vm968, %v961, %v963
        %v970 = vsel %vm968, %v963, %v965
        %v971 = vsel %vm968, %v965, %v967
        %975 = vst [vmem:[#allocation2 + $0x180] sm:$0xf] %v969
        %976 = vst [vmem:[#allocation2 + $0x188] sm:$0xf] %v970
        %977 = vst [vmem:[#allocation2 + $0x190] sm:$0xf] %v971
        %v978 = vld [vmem:[%s175] sm:$0xff]
        %v979 = vld [vmem:[%s175 + $0x8] sm:$0xff]
        %v982 = vcombine.low %v978, %v978
        %v983 = vcombine.low %v979, %v979
        %984 = vrot.lane.b32.xlu0 %v982, 27
        %v985 = vpop.permute.xlu0 %984
        %986 = vrot.lane.b32.xlu0 %v978, 27
        %v987 = vpop.permute.xlu0 %986
        %988 = vrot.lane.b32.xlu0 %v983, 27
        %v989 = vpop.permute.xlu0 %988
        %990 = vrot.lane.b32.xlu0 %v979, 27
        %v991 = vpop.permute.xlu0 %990
        %vm992 = vcmask 220160
        %v993 = vsel %vm992, %v985, %v987
        %v994 = vsel %vm992, %v987, %v989
        %v995 = vsel %vm992, %v989, %v991
        %999 = vst [vmem:[#allocation2 + $0x180] sm:$0xf0] %v993
        %1000 = vst [vmem:[#allocation2 + $0x188] sm:$0xf0] %v994
        %1001 = vst [vmem:[#allocation2 + $0x190] sm:$0xf0] %v995
        %v1002 = vld [vmem:[%s175] sm:$0xff]
        %v1003 = vld [vmem:[%s175 + $0x8] sm:$0xff]
        %v1006 = vcombine.high %v1002, %v1002
        %v1007 = vcombine.high %v1003, %v1003
        %1008 = vrot.lane.b32.xlu0 %v1002, 26
        %v1009 = vpop.permute.xlu0 %1008
        %1010 = vrot.lane.b32.xlu0 %v1006, 26
        %v1011 = vpop.permute.xlu0 %1010
        %1012 = vrot.lane.b32.xlu0 %v1003, 26
        %v1013 = vpop.permute.xlu0 %1012
        %1014 = vrot.lane.b32.xlu0 %v1007, 26
        %v1015 = vpop.permute.xlu0 %1014
        %vm1016 = vcmask 211968
        %v1017 = vsel %vm1016, %v1009, %v1011
        %v1018 = vsel %vm1016, %v1011, %v1013
        %v1019 = vsel %vm1016, %v1013, %v1015
        %1023 = vst [vmem:[#allocation2 + $0x198] sm:$0xf] %v1017
        %1024 = vst [vmem:[#allocation2 + $0x1a0] sm:$0xf] %v1018
        %1025 = vst [vmem:[#allocation2 + $0x1a8] sm:$0xf] %v1019
        %v1026 = vld [vmem:[%s175] sm:$0xff]
        %v1027 = vld [vmem:[%s175 + $0x8] sm:$0xff]
        %v1030 = vcombine.low %v1026, %v1026
        %v1031 = vcombine.low %v1027, %v1027
        %1032 = vrot.lane.b32.xlu0 %v1030, 8
        %v1033 = vpop.permute.xlu0 %1032
        %1034 = vrot.lane.b32.xlu0 %v1026, 8
        %v1035 = vpop.permute.xlu0 %1034
        %1036 = vrot.lane.b32.xlu0 %v1031, 8
        %v1037 = vpop.permute.xlu0 %1036
        %1038 = vrot.lane.b32.xlu0 %v1027, 8
        %v1039 = vpop.permute.xlu0 %1038
        %vm1040 = vcmask 64512
        %v1041 = vsel %vm1040, %v1033, %v1035
        %v1042 = vsel %vm1040, %v1035, %v1037
        %v1043 = vsel %vm1040, %v1037, %v1039
        %1047 = vst [vmem:[#allocation2 + $0x198] sm:$0xf0] %v1041
        %1048 = vst [vmem:[#allocation2 + $0x1a0] sm:$0xf0] %v1042
        %1049 = vst [vmem:[#allocation2 + $0x1a8] sm:$0xf0] %v1043
        %v1050 = vld [vmem:[%s175] sm:$0xff]
        %v1051 = vld [vmem:[%s175 + $0x8] sm:$0xff]
        %v1054 = vcombine.high %v1050, %v1050
        %v1055 = vcombine.high %v1051, %v1051
        %1056 = vrot.lane.b32.xlu0 %v1050, 7
        %v1057 = vpop.permute.xlu0 %1056
        %1058 = vrot.lane.b32.xlu0 %v1054, 7
        %v1059 = vpop.permute.xlu0 %1058
        %1060 = vrot.lane.b32.xlu0 %v1051, 7
        %v1061 = vpop.permute.xlu0 %1060
        %1062 = vrot.lane.b32.xlu0 %v1055, 7
        %v1063 = vpop.permute.xlu0 %1062
        %vm1064 = vcmask 56320
        %v1065 = vsel %vm1064, %v1057, %v1059
        %v1066 = vsel %vm1064, %v1059, %v1061
        %v1067 = vsel %vm1064, %v1061, %v1063
        %1071 = vst [vmem:[#allocation2 + $0x1b0] sm:$0xf] %v1065
        %1072 = vst [vmem:[#allocation2 + $0x1b8] sm:$0xf] %v1066
        %1073 = vst [vmem:[#allocation2 + $0x1c0] sm:$0xf] %v1067
        %v1074 = vld [vmem:[%s175] sm:$0xff]
        %v1075 = vld [vmem:[%s175 + $0x8] sm:$0xff]
        %v1078 = vcombine.low %v1074, %v1074
        %v1079 = vcombine.low %v1075, %v1075
        %1080 = vrot.lane.b32.xlu0 %v1078, 6
        %v1081 = vpop.permute.xlu0 %1080
        %1082 = vrot.lane.b32.xlu0 %v1074, 6
        %v1083 = vpop.permute.xlu0 %1082
        %1084 = vrot.lane.b32.xlu0 %v1079, 6
        %v1085 = vpop.permute.xlu0 %1084
        %1086 = vrot.lane.b32.xlu0 %v1075, 6
        %v1087 = vpop.permute.xlu0 %1086
        %vm1088 = vcmask 48128
        %v1089 = vsel %vm1088, %v1081, %v1083
        %v1090 = vsel %vm1088, %v1083, %v1085
        %v1091 = vsel %vm1088, %v1085, %v1087
        %1095 = vst [vmem:[#allocation2 + $0x1b0] sm:$0xf0] %v1089
        %1096 = vst [vmem:[#allocation2 + $0x1b8] sm:$0xf0] %v1090
        %1097 = vst [vmem:[#allocation2 + $0x1c0] sm:$0xf0] %v1091
        %v1098 = vld [vmem:[%s175] sm:$0xff]
        %v1099 = vld [vmem:[%s175 + $0x8] sm:$0xff]
        %v1102 = vcombine.high %v1098, %v1098
        %v1103 = vcombine.high %v1099, %v1099
        %1104 = vrot.lane.b32.xlu0 %v1098, 5
        %v1105 = vpop.permute.xlu0 %1104
        %1106 = vrot.lane.b32.xlu0 %v1102, 5
        %v1107 = vpop.permute.xlu0 %1106
        %1108 = vrot.lane.b32.xlu0 %v1099, 5
        %v1109 = vpop.permute.xlu0 %1108
        %1110 = vrot.lane.b32.xlu0 %v1103, 5
        %v1111 = vpop.permute.xlu0 %1110
        %vm1112 = vcmask 39936
        %v1113 = vsel %vm1112, %v1105, %v1107
        %v1114 = vsel %vm1112, %v1107, %v1109
        %v1115 = vsel %vm1112, %v1109, %v1111
        %1119 = vst [vmem:[#allocation2 + $0x1c8] sm:$0xf] %v1113
        %1120 = vst [vmem:[#allocation2 + $0x1d0] sm:$0xf] %v1114
        %1121 = vst [vmem:[#allocation2 + $0x1d8] sm:$0xf] %v1115
        %v1122 = vld [vmem:[%s175] sm:$0xff]
        %v1123 = vld [vmem:[%s175 + $0x8] sm:$0xff]
        %v1126 = vcombine.low %v1122, %v1122
        %v1127 = vcombine.low %v1123, %v1123
        %1128 = vrot.lane.b32.xlu0 %v1126, 4
        %v1129 = vpop.permute.xlu0 %1128
        %1130 = vrot.lane.b32.xlu0 %v1122, 4
        %v1131 = vpop.permute.xlu0 %1130
        %1132 = vrot.lane.b32.xlu0 %v1127, 4
        %v1133 = vpop.permute.xlu0 %1132
        %1134 = vrot.lane.b32.xlu0 %v1123, 4
        %v1135 = vpop.permute.xlu0 %1134
        %vm1136 = vcmask 31744
        %v1137 = vsel %vm1136, %v1129, %v1131
        %v1138 = vsel %vm1136, %v1131, %v1133
        %v1139 = vsel %vm1136, %v1133, %v1135
        %1143 = vst [vmem:[#allocation2 + $0x1c8] sm:$0xf0] %v1137
        %1144 = vst [vmem:[#allocation2 + $0x1d0] sm:$0xf0] %v1138
        %1145 = vst [vmem:[#allocation2 + $0x1d8] sm:$0xf0] %v1139
        %v1146 = vld [vmem:[%s175] sm:$0xff]
        %v1147 = vld [vmem:[%s175 + $0x8] sm:$0xff]
        %v1150 = vcombine.high %v1146, %v1146
        %v1151 = vcombine.high %v1147, %v1147
        %1152 = vrot.lane.b32.xlu0 %v1146, 3
        %v1153 = vpop.permute.xlu0 %1152
        %1154 = vrot.lane.b32.xlu0 %v1150, 3
        %v1155 = vpop.permute.xlu0 %1154
        %1156 = vrot.lane.b32.xlu0 %v1147, 3
        %v1157 = vpop.permute.xlu0 %1156
        %1158 = vrot.lane.b32.xlu0 %v1151, 3
        %v1159 = vpop.permute.xlu0 %1158
        %vm1160 = vcmask 23552
        %v1161 = vsel %vm1160, %v1153, %v1155
        %v1162 = vsel %vm1160, %v1155, %v1157
        %v1163 = vsel %vm1160, %v1157, %v1159
        %1167 = vst [vmem:[#allocation2 + $0x1e0] sm:$0xf] %v1161
        %1168 = vst [vmem:[#allocation2 + $0x1e8] sm:$0xf] %v1162
        %1169 = vst [vmem:[#allocation2 + $0x1f0] sm:$0xf] %v1163
        %v1170 = vld [vmem:[%s175] sm:$0xff]
        %v1171 = vld [vmem:[%s175 + $0x8] sm:$0xff]
        %v1174 = vcombine.low %v1170, %v1170
        %v1175 = vcombine.low %v1171, %v1171
        %1176 = vrot.lane.b32.xlu0 %v1174, 2
        %v1177 = vpop.permute.xlu0 %1176
        %1178 = vrot.lane.b32.xlu0 %v1170, 2
        %v1179 = vpop.permute.xlu0 %1178
        %1180 = vrot.lane.b32.xlu0 %v1175, 2
        %v1181 = vpop.permute.xlu0 %1180
        %1182 = vrot.lane.b32.xlu0 %v1171, 2
        %v1183 = vpop.permute.xlu0 %1182
        %vm1184 = vcmask 15360
        %v1185 = vsel %vm1184, %v1177, %v1179
        %v1186 = vsel %vm1184, %v1179, %v1181
        %v1187 = vsel %vm1184, %v1181, %v1183
        %1191 = vst [vmem:[#allocation2 + $0x1e0] sm:$0xf0] %v1185
        %1192 = vst [vmem:[#allocation2 + $0x1e8] sm:$0xf0] %v1186
        %1193 = vst [vmem:[#allocation2 + $0x1f0] sm:$0xf0] %v1187
        %v1194 = vld [vmem:[%s175 + $0x4] sm:$0xff]
        %v1195 = vld [vmem:[%s175 + $0xc] sm:$0xff]
        %v1198 = vcombine.high %v1194, %v1194
        %v1199 = vcombine.high %v1195, %v1195
        %1200 = vrot.lane.b32.xlu0 %v1194, 112
        %v1201 = vpop.permute.xlu0 %1200
        %1202 = vrot.lane.b32.xlu0 %v1198, 112
        %v1203 = vpop.permute.xlu0 %1202
        %1204 = vrot.lane.b32.xlu0 %v1195, 112
        %v1205 = vpop.permute.xlu0 %1204
        %1206 = vrot.lane.b32.xlu0 %v1199, 112
        %v1207 = vpop.permute.xlu0 %1206
        %vm1208 = vcmask 916480
        %v1209 = vsel %vm1208, %v1201, %v1203
        %v1210 = vsel %vm1208, %v1203, %v1205
        %v1211 = vsel %vm1208, %v1205, %v1207
        %1215 = vst [vmem:[#allocation2 + $0x1f8] sm:$0xf] %v1209
        %1216 = vst [vmem:[#allocation2 + $0x200] sm:$0xf] %v1210
        %1217 = vst [vmem:[#allocation2 + $0x208] sm:$0xf] %v1211
        %v1218 = vld [vmem:[%s175 + $0x4] sm:$0xff]
        %v1219 = vld [vmem:[%s175 + $0xc] sm:$0xff]
        %v1222 = vcombine.low %v1218, %v1218
        %v1223 = vcombine.low %v1219, %v1219
        %1224 = vrot.lane.b32.xlu0 %v1222, 111
        %v1225 = vpop.permute.xlu0 %1224
        %1226 = vrot.lane.b32.xlu0 %v1218, 111
        %v1227 = vpop.permute.xlu0 %1226
        %1228 = vrot.lane.b32.xlu0 %v1223, 111
        %v1229 = vpop.permute.xlu0 %1228
        %1230 = vrot.lane.b32.xlu0 %v1219, 111
        %v1231 = vpop.permute.xlu0 %1230
        %vm1232 = vcmask 908288
        %v1233 = vsel %vm1232, %v1225, %v1227
        %v1234 = vsel %vm1232, %v1227, %v1229
        %v1235 = vsel %vm1232, %v1229, %v1231
        %1239 = vst [vmem:[#allocation2 + $0x1f8] sm:$0xf0] %v1233
        %1240 = vst [vmem:[#allocation2 + $0x200] sm:$0xf0] %v1234
        %1241 = vst [vmem:[#allocation2 + $0x208] sm:$0xf0] %v1235
        %v1242 = vld [vmem:[%s175 + $0x4] sm:$0xff]
        %v1243 = vld [vmem:[%s175 + $0xc] sm:$0xff]
        %v1246 = vcombine.high %v1242, %v1242
        %v1247 = vcombine.high %v1243, %v1243
        %1248 = vrot.lane.b32.xlu0 %v1242, 110
        %v1249 = vpop.permute.xlu0 %1248
        %1250 = vrot.lane.b32.xlu0 %v1246, 110
        %v1251 = vpop.permute.xlu0 %1250
        %1252 = vrot.lane.b32.xlu0 %v1243, 110
        %v1253 = vpop.permute.xlu0 %1252
        %1254 = vrot.lane.b32.xlu0 %v1247, 110
        %v1255 = vpop.permute.xlu0 %1254
        %vm1256 = vcmask 900096
        %v1257 = vsel %vm1256, %v1249, %v1251
        %v1258 = vsel %vm1256, %v1251, %v1253
        %v1259 = vsel %vm1256, %v1253, %v1255
        %1263 = vst [vmem:[#allocation2 + $0x210] sm:$0xf] %v1257
        %1264 = vst [vmem:[#allocation2 + $0x218] sm:$0xf] %v1258
        %1265 = vst [vmem:[#allocation2 + $0x220] sm:$0xf] %v1259
        %v1266 = vld [vmem:[%s175 + $0x4] sm:$0xff]
        %v1267 = vld [vmem:[%s175 + $0xc] sm:$0xff]
        %v1270 = vcombine.low %v1266, %v1266
        %v1271 = vcombine.low %v1267, %v1267
        %1272 = vrot.lane.b32.xlu0 %v1270, 109
        %v1273 = vpop.permute.xlu0 %1272
        %1274 = vrot.lane.b32.xlu0 %v1266, 109
        %v1275 = vpop.permute.xlu0 %1274
        %1276 = vrot.lane.b32.xlu0 %v1271, 109
        %v1277 = vpop.permute.xlu0 %1276
        %1278 = vrot.lane.b32.xlu0 %v1267, 109
        %v1279 = vpop.permute.xlu0 %1278
        %vm1280 = vcmask 891904
        %v1281 = vsel %vm1280, %v1273, %v1275
        %v1282 = vsel %vm1280, %v1275, %v1277
        %v1283 = vsel %vm1280, %v1277, %v1279
        %1287 = vst [vmem:[#allocation2 + $0x210] sm:$0xf0] %v1281
        %1288 = vst [vmem:[#allocation2 + $0x218] sm:$0xf0] %v1282
        %1289 = vst [vmem:[#allocation2 + $0x220] sm:$0xf0] %v1283
        %v1290 = vld [vmem:[%s175 + $0x4] sm:$0xff]
        %v1291 = vld [vmem:[%s175 + $0xc] sm:$0xff]
        %v1294 = vcombine.high %v1290, %v1290
        %v1295 = vcombine.high %v1291, %v1291
        %1296 = vrot.lane.b32.xlu0 %v1290, 108
        %v1297 = vpop.permute.xlu0 %1296
        %1298 = vrot.lane.b32.xlu0 %v1294, 108
        %v1299 = vpop.permute.xlu0 %1298
        %1300 = vrot.lane.b32.xlu0 %v1291, 108
        %v1301 = vpop.permute.xlu0 %1300
        %1302 = vrot.lane.b32.xlu0 %v1295, 108
        %v1303 = vpop.permute.xlu0 %1302
        %vm1304 = vcmask 883712
        %v1305 = vsel %vm1304, %v1297, %v1299
        %v1306 = vsel %vm1304, %v1299, %v1301
        %v1307 = vsel %vm1304, %v1301, %v1303
        %1311 = vst [vmem:[#allocation2 + $0x228] sm:$0xf] %v1305
        %1312 = vst [vmem:[#allocation2 + $0x230] sm:$0xf] %v1306
        %1313 = vst [vmem:[#allocation2 + $0x238] sm:$0xf] %v1307
        %v1314 = vld [vmem:[%s175 + $0x4] sm:$0xff]
        %v1315 = vld [vmem:[%s175 + $0xc] sm:$0xff]
        %v1318 = vcombine.low %v1314, %v1314
        %v1319 = vcombine.low %v1315, %v1315
        %1320 = vrot.lane.b32.xlu0 %v1318, 107
        %v1321 = vpop.permute.xlu0 %1320
        %1322 = vrot.lane.b32.xlu0 %v1314, 107
        %v1323 = vpop.permute.xlu0 %1322
        %1324 = vrot.lane.b32.xlu0 %v1319, 107
        %v1325 = vpop.permute.xlu0 %1324
        %1326 = vrot.lane.b32.xlu0 %v1315, 107
        %v1327 = vpop.permute.xlu0 %1326
        %vm1328 = vcmask 875520
        %v1329 = vsel %vm1328, %v1321, %v1323
        %v1330 = vsel %vm1328, %v1323, %v1325
        %v1331 = vsel %vm1328, %v1325, %v1327
        %1335 = vst [vmem:[#allocation2 + $0x228] sm:$0xf0] %v1329
        %1336 = vst [vmem:[#allocation2 + $0x230] sm:$0xf0] %v1330
        %1337 = vst [vmem:[#allocation2 + $0x238] sm:$0xf0] %v1331
        %v1338 = vld [vmem:[%s175 + $0x4] sm:$0xff]
        %v1339 = vld [vmem:[%s175 + $0xc] sm:$0xff]
        %v1342 = vcombine.high %v1338, %v1338
        %v1343 = vcombine.high %v1339, %v1339
        %1344 = vrot.lane.b32.xlu0 %v1338, 106
        %v1345 = vpop.permute.xlu0 %1344
        %1346 = vrot.lane.b32.xlu0 %v1342, 106
        %v1347 = vpop.permute.xlu0 %1346
        %1348 = vrot.lane.b32.xlu0 %v1339, 106
        %v1349 = vpop.permute.xlu0 %1348
        %1350 = vrot.lane.b32.xlu0 %v1343, 106
        %v1351 = vpop.permute.xlu0 %1350
        %vm1352 = vcmask 867328
        %v1353 = vsel %vm1352, %v1345, %v1347
        %v1354 = vsel %vm1352, %v1347, %v1349
        %v1355 = vsel %vm1352, %v1349, %v1351
        %1359 = vst [vmem:[#allocation2 + $0x240] sm:$0xf] %v1353
        %1360 = vst [vmem:[#allocation2 + $0x248] sm:$0xf] %v1354
        %1361 = vst [vmem:[#allocation2 + $0x250] sm:$0xf] %v1355
        %v1362 = vld [vmem:[#allocation6] sm:$0xff]
        %v1363 = vld [vmem:[#allocation6 + $0x8] sm:$0xff]
        %v1364 = vld [vmem:[#allocation6 + $0x10] sm:$0xff]
        %v1365 = vld [vmem:[#allocation6 + $0x18] sm:$0xff]
        %v1366 = vld [vmem:[#allocation6 + $0x20] sm:$0xff]
        %v1367 = vld [vmem:[#allocation6 + $0x28] sm:$0xff]
        %v1368 = vld [vmem:[#allocation6 + $0x30] sm:$0xff]
        %v1369 = vld [vmem:[#allocation6 + $0x38] sm:$0xff]
        %v1370 = vld [vmem:[#allocation2] sm:$0xff]
        %v1371 = vld [vmem:[#allocation2 + $0x8] sm:$0xff]
        %v1372 = vld [vmem:[#allocation2 + $0x10] sm:$0xff]
        %v1373 = vld [vmem:[#allocation2 + $0x18] sm:$0xff]
        %v1374 = vld [vmem:[#allocation2 + $0x20] sm:$0xff]
        %v1375 = vld [vmem:[#allocation2 + $0x28] sm:$0xff]
        %v1376 = vld [vmem:[#allocation2 + $0x30] sm:$0xff]
        %v1377 = vld [vmem:[#allocation2 + $0x38] sm:$0xff]
        %v1378 = vld [vmem:[#allocation2 + $0x40] sm:$0xff]
        %v1379 = vld [vmem:[#allocation2 + $0x48] sm:$0xff]
        %v1380 = vld [vmem:[#allocation2 + $0x50] sm:$0xff]
        %v1381 = vld [vmem:[#allocation2 + $0x58] sm:$0xff]
        %v1382 = vld [vmem:[#allocation2 + $0x60] sm:$0xff]
        %v1383 = vld [vmem:[#allocation2 + $0x68] sm:$0xff]
        %v1384 = vld [vmem:[#allocation2 + $0x70] sm:$0xff]
        %v1385 = vld [vmem:[#allocation2 + $0x78] sm:$0xff]
        %v1386 = vld [vmem:[#allocation2 + $0x80] sm:$0xff]
        %v1387 = vld [vmem:[#allocation2 + $0x88] sm:$0xff]
        %v1388 = vld [vmem:[#allocation2 + $0x90] sm:$0xff]
        %v1389 = vld [vmem:[#allocation2 + $0x98] sm:$0xff]
        %v1390 = vld [vmem:[#allocation2 + $0xa0] sm:$0xff]
        %v1391 = vld [vmem:[#allocation2 + $0xa8] sm:$0xff]
        %v1392 = vld [vmem:[#allocation2 + $0xb0] sm:$0xff]
        %v1393 = vld [vmem:[#allocation2 + $0xb8] sm:$0xff]
        %v1394 = vld [vmem:[#allocation2 + $0xc0] sm:$0xff]
        %v1395 = vld [vmem:[#allocation2 + $0xc8] sm:$0xff]
        %v1396 = vld [vmem:[#allocation2 + $0xd0] sm:$0xff]
        %v1397 = vld [vmem:[#allocation2 + $0xd8] sm:$0xff]
        %v1398 = vld [vmem:[#allocation2 + $0xe0] sm:$0xff]
        %v1399 = vld [vmem:[#allocation2 + $0xe8] sm:$0xff]
        %v1400 = vld [vmem:[#allocation2 + $0xf0] sm:$0xff]
        %v1401 = vld [vmem:[#allocation2 + $0xf8] sm:$0xff]
        %v1402 = vld [vmem:[#allocation2 + $0x100] sm:$0xff]
        %v1403 = vld [vmem:[#allocation2 + $0x108] sm:$0xff]
        %v1404 = vld [vmem:[#allocation2 + $0x110] sm:$0xff]
        %v1405 = vld [vmem:[#allocation2 + $0x118] sm:$0xff]
        %v1406 = vld [vmem:[#allocation2 + $0x120] sm:$0xff]
        %v1407 = vld [vmem:[#allocation2 + $0x128] sm:$0xff]
        %v1408 = vld [vmem:[#allocation2 + $0x130] sm:$0xff]
        %v1409 = vld [vmem:[#allocation2 + $0x138] sm:$0xff]
        %v1410 = vld [vmem:[#allocation2 + $0x140] sm:$0xff]
        %v1411 = vld [vmem:[#allocation2 + $0x148] sm:$0xff]
        %v1412 = vld [vmem:[#allocation2 + $0x150] sm:$0xff]
        %v1413 = vld [vmem:[#allocation2 + $0x158] sm:$0xff]
        %v1414 = vld [vmem:[#allocation2 + $0x160] sm:$0xff]
        %v1415 = vld [vmem:[#allocation2 + $0x168] sm:$0xff]
        %v1416 = vld [vmem:[#allocation2 + $0x170] sm:$0xff]
        %v1417 = vld [vmem:[#allocation2 + $0x178] sm:$0xff]
        %v1418 = vld [vmem:[#allocation2 + $0x180] sm:$0xff]
        %v1419 = vld [vmem:[#allocation2 + $0x188] sm:$0xff]
        %v1420 = vld [vmem:[#allocation2 + $0x190] sm:$0xff]
        %v1421 = vld [vmem:[#allocation2 + $0x198] sm:$0xff]
        %v1422 = vld [vmem:[#allocation2 + $0x1a0] sm:$0xff]
        %v1423 = vld [vmem:[#allocation2 + $0x1a8] sm:$0xff]
        %v1424 = vld [vmem:[#allocation2 + $0x1b0] sm:$0xff]
        %v1425 = vld [vmem:[#allocation2 + $0x1b8] sm:$0xff]
        %v1426 = vld [vmem:[#allocation2 + $0x1c0] sm:$0xff]
        %v1427 = vld [vmem:[#allocation2 + $0x1c8] sm:$0xff]
        %v1428 = vld [vmem:[#allocation2 + $0x1d0] sm:$0xff]
        %v1429 = vld [vmem:[#allocation2 + $0x1d8] sm:$0xff]
        %v1430 = vld [vmem:[#allocation2 + $0x1e0] sm:$0xff]
        %v1431 = vld [vmem:[#allocation2 + $0x1e8] sm:$0xff]
        %v1432 = vld [vmem:[#allocation2 + $0x1f0] sm:$0xff]
        %v1433 = vld [vmem:[#allocation2 + $0x1f8] sm:$0xff]
        %v1434 = vld [vmem:[#allocation2 + $0x200] sm:$0xff]
        %v1435 = vld [vmem:[#allocation2 + $0x208] sm:$0xff]
        %v1436 = vld [vmem:[#allocation2 + $0x210] sm:$0xff]
        %v1437 = vld [vmem:[#allocation2 + $0x218] sm:$0xff]
        %v1438 = vld [vmem:[#allocation2 + $0x220] sm:$0xff]
        %v1439 = vld [vmem:[#allocation2 + $0x228] sm:$0xff]
        %v1440 = vld [vmem:[#allocation2 + $0x230] sm:$0xff]
        %v1441 = vld [vmem:[#allocation2 + $0x238] sm:$0xff]
        %v1442 = vld [vmem:[#allocation2 + $0x240] sm:$0xf]
        %v1443 = vld [vmem:[#allocation2 + $0x248] sm:$0xf]
        %v1444 = vld [vmem:[#allocation2 + $0x250] sm:$0xf]
        %v1445 = vld [vmem:[%s2] sm:$0xff]
        %v1446 = vld [vmem:[%s2 + $0x8] sm:$0xff]
        %v1447 = vld [vmem:[%s2 + $0x10] sm:$0xff]
        %v1448 = vld [vmem:[%s2 + $0x18] sm:$0xff]
        %1450 = vset.pattern.permute.xlu0 0
        %1451 = vperm.xlu0 %1450, %v1445
        %v1452 = vpop.permute.xlu0 %1451
        %1455 = vset.pattern.permute.xlu0 0
        %1456 = vperm.xlu0 %1455, %v1446
        %v1457 = vpop.permute.xlu0 %1456
        %1460 = vset.pattern.permute.xlu0 0
        %1461 = vperm.xlu0 %1460, %v1447
        %v1462 = vpop.permute.xlu0 %1461
        %1465 = vset.pattern.permute.xlu0 0
        %1466 = vperm.xlu0 %1465, %v1448
        %v1467 = vpop.permute.xlu0 %1466
        %vm1469 = vcmask 556032
        %v1471 = vsel %vm1469, %v1363, 0
        %v1474 = vsel %vm1469, %v1365, 0
        %v1477 = vsel %vm1469, %v1367, 0
        %v1480 = vsel %vm1469, %v1369, 0
        %vm1482 = vcmask 1043456
        %v1484 = vsel %vm1482, %v1442, 0
        %v1487 = vsel %vm1482, %v1443, 0
        %v1490 = vsel %vm1482, %v1444, 0
        %1492 = vmatprep.subr.mxu0 %v1371
        %1493 = vmatpush1.msra.mxu0 %v1370
        %1494 = vmatprep.subr.mxu0 %v1374
        %1495 = vmatpush1.msra.mxu0 %v1373
        %1496 = vmatprep.subr.mxu0 %v1377
        %1497 = vmatpush1.msra.mxu0 %v1376
        %1498 = vmatprep.subr.mxu0 %v1380
        %1499 = vmatpush1.msra.mxu0 %v1379
        %1500 = vmatprep.subr.mxu0 %v1383
        %1501 = vmatpush1.msra.mxu0 %v1382
        %1502 = vmatprep.subr.mxu0 %v1386
        %1503 = vmatpush1.msra.mxu0 %v1385
        %1504 = vmatprep.subr.mxu0 %v1389
        %1505 = vmatpush1.msra.mxu0 %v1388
        %1506 = vmatprep.subr.mxu0 %v1392
        %1507 = vmatpush1.msra.mxu0 %v1391
        %1508 = vmatprep.subr.mxu0 %v1395
        %1509 = vmatpush1.msra.mxu0 %v1394
        %1510 = vmatprep.subr.mxu0 %v1398
        %1511 = vmatpush1.msra.mxu0 %v1397
        %1512 = vmatprep.subr.mxu0 %v1401
        %1513 = vmatpush1.msra.mxu0 %v1400
        %1514 = vmatprep.subr.mxu0 %v1404
        %1515 = vmatpush1.msra.mxu0 %v1403
        %1516 = vmatprep.subr.mxu0 %v1407
        %1517 = vmatpush1.msra.mxu0 %v1406
        %1518 = vmatprep.subr.mxu0 %v1410
        %1519 = vmatpush1.msra.mxu0 %v1409
        %1520 = vmatprep.subr.mxu0 %v1413
        %1521 = vmatpush1.msra.mxu0 %v1412
        %1522 = vmatprep.subr.mxu0 %v1416
        %1523 = vmatpush1.msra.mxu0 %v1415
        %1524 = vmatprep.subr.mxu0 %v1419
        %1525 = vmatpush1.msra.mxu0 %v1418
        %1526 = vmatprep.subr.mxu0 %v1422
        %1527 = vmatpush1.msra.mxu0 %v1421
        %1528 = vmatprep.subr.mxu0 %v1425
        %1529 = vmatpush1.msra.mxu0 %v1424
        %1530 = vmatprep.subr.mxu0 %v1428
        %1531 = vmatpush1.msra.mxu0 %v1427
        %1532 = vmatprep.subr.mxu0 %v1431
        %1533 = vmatpush1.msra.mxu0 %v1430
        %1534 = vmatprep.subr.mxu0 %v1434
        %1535 = vmatpush1.msra.mxu0 %v1433
        %1536 = vmatprep.subr.mxu0 %v1437
        %1537 = vmatpush1.msra.mxu0 %v1436
        %1538 = vmatprep.subr.mxu0 %v1440
        %1539 = vmatpush1.msra.mxu0 %v1439
        %1540 = vmatprep.subr.mxu0 %v1487
        %1541 = vmatpush1.msra.mxu0 %v1484
        %1542 = vmatprep.subr.mxu0 0.0
        %1543 = vmatpush1.msra.mxu0 0.0
        %1544 = vmatprep.subr.mxu0 0.0
        %1545 = vmatpush1.msra.mxu0 0.0
        %1546 = vmatprep.subr.mxu0 0.0
        %1547 = vmatpush1.msra.mxu0 0.0
        %1548 = vmatprep.subr.mxu0 0.0
        %1549 = vmatpush1.msra.mxu0 0.0
        %1550 = vmatprep.subr.mxu0 0.0
        %1551 = vmatpush1.msra.mxu0 0.0
        %1552 = vmatprep.subr.mxu0 0.0
        %1553 = vmatpush1.msra.mxu0 0.0
        %1554 = vmatprep.subr.mxu0 0.0
        %1555 = vmatpush1.msra.mxu0 0.0
        %1556 = vmatprep.mubr.f32.mxu0 %v1471
        %1557 = vmatmul.mubr.f32.gmra.mrb[0].mxu0 %v1362
        %v1558 = vpop.f32.mrb[0].mxu0
        %v1559 = vadd.f32 %v1452, %v1558
        %v1560 = vpop.f32.mrb[0].mxu0
        %v1561 = vadd.f32 %v1452, %v1560
        %1562 = vmatprep.mubr.f32.mxu0 %v1474
        %1563 = vmatmul.mubr.f32.gmra.mrb[0].mxu0 %v1364
        %v1564 = vpop.f32.mrb[0].mxu0
        %v1565 = vadd.f32 %v1457, %v1564
        %v1566 = vpop.f32.mrb[0].mxu0
        %v1567 = vadd.f32 %v1457, %v1566
        %1568 = vmatprep.mubr.f32.mxu0 %v1477
        %1569 = vmatmul.mubr.f32.gmra.mrb[0].mxu0 %v1366
        %v1570 = vpop.f32.mrb[0].mxu0
        %v1571 = vadd.f32 %v1462, %v1570
        %v1572 = vpop.f32.mrb[0].mxu0
        %v1573 = vadd.f32 %v1462, %v1572
        %1574 = vmatprep.mubr.f32.mxu0 %v1480
        %1575 = vmatmul.mubr.f32.gmra.mrb[0].mxu0 %v1368
        %v1576 = vpop.f32.mrb[0].mxu0
        %v1577 = vadd.f32 %v1467, %v1576
        %v1578 = vpop.f32.mrb[0].mxu0
        %v1579 = vadd.f32 %v1467, %v1578
        %1580 = vdwg.mxu0
        %1581 = vmatprep.subr.mxu0 0.0
        %1582 = vmatpush1.msra.mxu0 %v1372
        %1583 = vmatprep.subr.mxu0 0.0
        %1584 = vmatpush1.msra.mxu0 %v1375
        %1585 = vmatprep.subr.mxu0 0.0
        %1586 = vmatpush1.msra.mxu0 %v1378
        %1587 = vmatprep.subr.mxu0 0.0
        %1588 = vmatpush1.msra.mxu0 %v1381
        %1589 = vmatprep.subr.mxu0 0.0
        %1590 = vmatpush1.msra.mxu0 %v1384
        %1591 = vmatprep.subr.mxu0 0.0
        %1592 = vmatpush1.msra.mxu0 %v1387
        %1593 = vmatprep.subr.mxu0 0.0
        %1594 = vmatpush1.msra.mxu0 %v1390
        %1595 = vmatprep.subr.mxu0 0.0
        %1596 = vmatpush1.msra.mxu0 %v1393
        %1597 = vmatprep.subr.mxu0 0.0
        %1598 = vmatpush1.msra.mxu0 %v1396
        %1599 = vmatprep.subr.mxu0 0.0
        %1600 = vmatpush1.msra.mxu0 %v1399
        %1601 = vmatprep.subr.mxu0 0.0
        %1602 = vmatpush1.msra.mxu0 %v1402
        %1603 = vmatprep.subr.mxu0 0.0
        %1604 = vmatpush1.msra.mxu0 %v1405
        %1605 = vmatprep.subr.mxu0 0.0
        %1606 = vmatpush1.msra.mxu0 %v1408
        %1607 = vmatprep.subr.mxu0 0.0
        %1608 = vmatpush1.msra.mxu0 %v1411
        %1609 = vmatprep.subr.mxu0 0.0
        %1610 = vmatpush1.msra.mxu0 %v1414
        %1611 = vmatprep.subr.mxu0 0.0
        %1612 = vmatpush1.msra.mxu0 %v1417
        %1613 = vmatprep.subr.mxu0 0.0
        %1614 = vmatpush1.msra.mxu0 %v1420
        %1615 = vmatprep.subr.mxu0 0.0
        %1616 = vmatpush1.msra.mxu0 %v1423
        %1617 = vmatprep.subr.mxu0 0.0
        %1618 = vmatpush1.msra.mxu0 %v1426
        %1619 = vmatprep.subr.mxu0 0.0
        %1620 = vmatpush1.msra.mxu0 %v1429
        %1621 = vmatprep.subr.mxu0 0.0
        %1622 = vmatpush1.msra.mxu0 %v1432
        %1623 = vmatprep.subr.mxu0 0.0
        %1624 = vmatpush1.msra.mxu0 %v1435
        %1625 = vmatprep.subr.mxu0 0.0
        %1626 = vmatpush1.msra.mxu0 %v1438
        %1627 = vmatprep.subr.mxu0 0.0
        %1628 = vmatpush1.msra.mxu0 %v1441
        %1629 = vmatprep.subr.mxu0 0.0
        %1630 = vmatpush1.msra.mxu0 %v1490
        %1631 = vmatprep.subr.mxu0 0.0
        %1632 = vmatpush1.msra.mxu0 0.0
        %1633 = vmatprep.subr.mxu0 0.0
        %1634 = vmatpush1.msra.mxu0 0.0
        %1635 = vmatprep.subr.mxu0 0.0
        %1636 = vmatpush1.msra.mxu0 0.0
        %1637 = vmatprep.subr.mxu0 0.0
        %1638 = vmatpush1.msra.mxu0 0.0
        %1639 = vmatprep.subr.mxu0 0.0
        %1640 = vmatpush1.msra.mxu0 0.0
        %1641 = vmatprep.subr.mxu0 0.0
        %1642 = vmatpush1.msra.mxu0 0.0
        %1643 = vmatprep.subr.mxu0 0.0
        %1644 = vmatpush1.msra.mxu0 0.0
        %1645 = vmatprep.mubr.f32.mxu0 %v1471
        %1646 = vmatmul.mubr.f32.gmra.mrb[0].mxu0 %v1362
        %v1647 = vpop.f32.mrb[0].mxu0
        %v1648 = vadd.f32 %v1452, %v1647
        %v1649 = vpop.f32.mrb[0].mxu0
        %1650 = vmatprep.mubr.f32.mxu0 %v1474
        %1651 = vmatmul.mubr.f32.gmra.mrb[0].mxu0 %v1364
        %v1652 = vpop.f32.mrb[0].mxu0
        %v1653 = vadd.f32 %v1457, %v1652
        %v1654 = vpop.f32.mrb[0].mxu0
        %1655 = vmatprep.mubr.f32.mxu0 %v1477
        %1656 = vmatmul.mubr.f32.gmra.mrb[0].mxu0 %v1366
        %v1657 = vpop.f32.mrb[0].mxu0
        %v1658 = vadd.f32 %v1462, %v1657
        %v1659 = vpop.f32.mrb[0].mxu0
        %1660 = vmatprep.mubr.f32.mxu0 %v1480
        %1661 = vmatmul.mubr.f32.gmra.mrb[0].mxu0 %v1368
        %v1662 = vpop.f32.mrb[0].mxu0
        %v1663 = vadd.f32 %v1467, %v1662
        %v1664 = vpop.f32.mrb[0].mxu0
        %1665 = vdwg.mxu0
        %1666 = vst [vmem:[%s201] sm:$0xff] %v1559
        %1667 = vst [vmem:[%s201 + $0x8] sm:$0xff] %v1561
        %1668 = vst [vmem:[%s201 + $0x10] sm:$0xff] %v1648
        %1669 = vst [vmem:[%s201 + $0x18] sm:$0xff] %v1565
        %1670 = vst [vmem:[%s201 + $0x20] sm:$0xff] %v1567
        %1671 = vst [vmem:[%s201 + $0x28] sm:$0xff] %v1653
        %1672 = vst [vmem:[%s201 + $0x30] sm:$0xff] %v1571
        %1673 = vst [vmem:[%s201 + $0x38] sm:$0xff] %v1573
        %1674 = vst [vmem:[%s201 + $0x40] sm:$0xff] %v1658
        %1675 = vst [vmem:[%s201 + $0x48] sm:$0xff] %v1577
        %1676 = vst [vmem:[%s201 + $0x50] sm:$0xff] %v1579
        %1677 = vst [vmem:[%s201 + $0x58] sm:$0xff] %v1663
        %s1678 = sand.u32 %s97, 1
        %s1679 = scalar_lea.sflag [#allocation5], %s1678
        %s1680 = sand.u32 %s97, 1
        %s1681 = smul.addr %s1680, 96
        %s1682 = scalar_lea.vmem [#allocation8], %s1681
        // Predicated region
        $region41: #{tpu_custom_call.1} parent=31 // pred_check
          %p1683 = pneg %p107
        $region42: #{tpu_custom_call.1} parent=31 // pred_check_branch
          %1685 = sbr.rel (%p1683) target = $region44
        $region43: #{tpu_custom_call.1} parent=31 // pred_region
          %s1687 = ssub.s32 1536, 1536
          %1688 = vsyncadd %s1679, %s1687
          %s1689 = smul.addr %s21, 12
          %s1690 = smul.addr %s1689, 128
          %s1691 = scalar_lea.hbm %s3, %s1690
          %s1692 = sshll.u32 %s1682, 4
          %s1693 = int_to_ptr.vmem [resolvable:$true] %s1692
          %1698 = dma.vmem_to_hbm [thread:$0]  %s1693, 1536, %s1691, %s1679, 384, 384, 24
        $region44: #{tpu_custom_call.1} parent=31 // pred_fallthru
          _
      $region32: #{tpu_custom_call.1} parent=5 // pred_fallthru
        _
      %p1699 = scmp.le.s32.totalorder 2, %s16
      // Predicated region
      $region45: #{tpu_custom_call.1} parent=5 // pred_check
        %p1700 = pneg %p1699
      $region46: #{tpu_custom_call.1} parent=5 // pred_check_branch
        %1702 = sbr.rel (%p1700) target = $region48
      $region47: #{tpu_custom_call.1} parent=5 // pred_region
        %s1703 = ssub.s32 %s16, 2
        // Predicated region
        $region49: #{tpu_custom_call.1} parent=47 // pred_check
          %p1704 = pneg %p113
        $region50: #{tpu_custom_call.1} parent=47 // pred_check_branch
          %1706 = sbr.rel (%p1704) target = $region52
        $region51: #{tpu_custom_call.1} parent=47 // pred_region
          %s1707 = sand.u32 %s98, 1
          %s1708 = scalar_lea.sflag [#allocation5], %s1707
          %s1709 = sand.u32 %s98, 1
          %s1710 = smul.addr %s1709, 96
          %s1711 = scalar_lea.vmem [#allocation8], %s1710
          %1712 = dma.done %s1708, 1536
        $region52: #{tpu_custom_call.1} parent=47 // pred_fallthru
          _
      $region48: #{tpu_custom_call.1} parent=5 // pred_fallthru
        _
    $region6: #{tpu_custom_call.1} parent=1 // loop_footer
      %s20 = sadd.s32 1, %s16
    $region7: #{tpu_custom_call.1} parent=1 // loop_footer_branch
      %15 = sbr.rel target = $region3
    $region8: #{tpu_custom_call.1} parent=1 // loop_exit
      _
    %1713 = vsyncpa [#allocation4], 1
    %s1714 = scalar_lea.sflag [#allocation4], 1
    %1715 = vsyncpa %s1714, 1
    %1716 = vsyncpa [#allocation7], 1
    %1717 = vsyncpa [#allocation5], 1
    %s1718 = scalar_lea.sflag [#allocation5], 1
    %1719 = vsyncpa %s1718, 1

</llo_original>
